<compile_context>
chip_gen: v6e
topology: v6e:2x2x1
jax: 0.10.0
libtpu: 0.0.40
codegen_flags: <defaults>
</compile_context>

<pallas_src>
import functools

import jax
import jax.numpy as jnp
from jax.experimental import pallas as pl
from jax.experimental.pallas import tpu as pltpu


_CLASS_PAD = 128  # lane-dense padded class width for the output store path


def _full_spec(shape):
    # whole-array block (no grid), resident in VMEM
    return pl.BlockSpec(shape, lambda: (0,) * len(shape))


def gated_gcn_kernel(
    x_ref,     # [N, F]   node features
    adj_ref,   # [N, N]   dense adjacency, adj[i, j] = sum of edge weights j -> i
    wf_ref,    # [F, H]   first_lin weight (transposed)
    bf_ref,    # [1, H]   first_lin bias
    wn1_ref,   # [H, H]   block-1 nn1 weight (transposed)
    bn1_ref,   # [1, H]   block-1 nn1 bias
    wn2_ref,   # [H, H]   block-2 nn1 weight (transposed)
    bn2_ref,   # [1, H]   block-2 nn1 bias
    wgi_ref,   # [H, 4H]  GRU input->gates  [Wir^T | Wiz^T | Win^T | 0]
    wgh_ref,   # [H, 4H]  GRU hidden->gates [Whr^T | Whz^T | 0 | Whn^T]
    bg_ref,    # [1, 4H]  [bir+bhr | biz+bhz | bin | bhn]
    fuse_ref,  # [L]      fuse_weight (SMEM scalars)
    wo_ref,    # [H, CP]  out weight, zero-padded to 128 lanes
    bo_ref,    # [1, CP]  out bias, padded with -1e30 beyond the real classes
    out_ref,   # [N, CP]  padded log-probabilities (lane-dense store)
):
    f32 = jnp.float32
    H = wf_ref.shape[1]

    def sigmoid(v):
        return 1.0 / (1.0 + jnp.exp(-v))

    adj = adj_ref[...].astype(f32)

    # first_lin + ReLU  (dropout p=0.5 identity in eval mode)
    h = jnp.dot(x_ref[...], wf_ref[...], preferred_element_type=f32) + bf_ref[...]
    h = jnp.maximum(h, 0.0)

    wgi = wgi_ref[...]
    wgh = wgh_ref[...]
    bg = bg_ref[...]

    def gated_block(h_in, wn, bn, fuse_w):
        x_first = h_in
        h_prev = h_in
        # GatedConv: aggr='add' message passing (edge_weight folded into adj)
        agg = jnp.dot(adj, h_in, preferred_element_type=f32)
        # GatedBlock.nn1  (dropout p=0.2 identity in eval mode)
        x_in = jnp.dot(agg, wn, preferred_element_type=f32) + bn
        # GRUCell: single lane-dense [N, 4H] gate pre-activation tensor
        g = (jnp.dot(x_in, wgi, preferred_element_type=f32)
             + jnp.dot(h_prev, wgh, preferred_element_type=f32)
             + bg)
        r = sigmoid(g[:, 0:H])
        z = sigmoid(g[:, H:2 * H])
        n = jnp.tanh(g[:, 2 * H:3 * H] + r * g[:, 3 * H:4 * H])
        h_new = (1.0 - z) * n + z * h_prev
        # fused residual
        return h_new + fuse_w * x_first

    h = gated_block(h, wn1_ref[...], bn1_ref[...], fuse_ref[0])
    h = gated_block(h, wn2_ref[...], bn2_ref[...], fuse_ref[1])

    # out linear + log_softmax over the padded (lane-dense) class dim;
    # pad columns carry logits ~= -1e30 and contribute exp(.) == 0.
    logits = jnp.dot(h, wo_ref[...], preferred_element_type=f32) + bo_ref[...]
    m = jnp.max(logits, axis=-1, keepdims=True)
    s = logits - m
    lse = jnp.log(jnp.sum(jnp.exp(s), axis=-1, keepdims=True))
    out_ref[...] = s - lse


@functools.partial(jax.jit, static_argnames=("num_nodes",))
def gated_gcn_forward(x, edge_index, params, num_nodes, edge_weight=None):
    """x: [N, F] f32, edge_index: [2, E] int32 (row 0 = src, row 1 = dst),
    edge_weight: optional [E] f32.  Returns log-probs [N, num_class]."""
    N, F = x.shape
    H = params["first_lin_w"].shape[0]
    C = params["out_w"].shape[0]
    L = params["fuse"].shape[0]
    assert L == 2, "kernel is specialized to num_layers=2"
    CP = _CLASS_PAD
    f32 = jnp.float32

    # --- dense adjacency: adj[i, j] = sum of weights of edges j -> i --------
    src, dst = edge_index[0], edge_index[1]
    w = jnp.ones(src.shape, f32) if edge_weight is None else edge_weight.astype(f32)
    adj = jnp.zeros((num_nodes, num_nodes), f32).at[dst, src].add(w)
    if edge_weight is None:
        # integer edge counts: bf16 exact for in-degree <= 256, halves adj DMA
        adj = adj.astype(jnp.bfloat16)
    # TODO(synk): for large sparse graphs replace the dense O(N^2) adjacency
    # with a scalar-prefetched edge-list segment-sum inside the kernel.

    # --- repack weights into kernel layout ----------------------------------
    wf = params["first_lin_w"].T                          # [F, H]
    bf = params["first_lin_b"].reshape(1, H)
    wn1 = params["conv1_nn1_w"].T
    bn1 = params["conv1_nn1_b"].reshape(1, H)
    wn2 = params["conv2_nn1_w"].T
    bn2 = params["conv2_nn1_b"].reshape(1, H)

    wir, wiz, win = jnp.split(params["rnn_w_ih"], 3, axis=0)   # each [H, H]
    whr, whz, whn = jnp.split(params["rnn_w_hh"], 3, axis=0)
    bir, biz, bin_ = jnp.split(params["rnn_b_ih"], 3)
    bhr, bhz, bhn = jnp.split(params["rnn_b_hh"], 3)
    zhh = jnp.zeros((H, H), f32)
    wgi = jnp.concatenate([wir.T, wiz.T, win.T, zhh], axis=1)  # [H, 4H]
    wgh = jnp.concatenate([whr.T, whz.T, zhh, whn.T], axis=1)  # [H, 4H]
    bg = jnp.concatenate([bir + bhr, biz + bhz, bin_, bhn]).reshape(1, 4 * H)

    # lane-dense padded output head: zero weights, -1e30 bias in pad columns
    wo = jnp.zeros((H, CP), f32).at[:, :C].set(params["out_w"].T)
    bo = jnp.full((1, CP), -1e30, f32).at[0, :C].set(params["out_b"])

    fuse = params["fuse"].astype(f32)

    # --- explicit VMEM budget guard (whole-array, gridless design) ----------
    adj_bytes = N * N * (2 if edge_weight is None else 4)
    weight_bytes = 4 * (F * H + 4 * H * H + 2 * H * 4 * H + 4 * H + H * CP + CP + 6 * H)
    act_bytes = 8 * N * max(F, 4 * H) * 4        # rough bound on live temporaries
    vmem_est = adj_bytes + 4 * N * F + weight_bytes + 4 * N * CP + act_bytes
    if vmem_est > 48 * 1024 * 1024:
        raise ValueError(
            f"estimated VMEM footprint {vmem_est / 2**20:.1f} MiB exceeds the budget; "
            "tile over node rows / use a sparse edge-list aggregation for this size")

    flops = 2 * (N * F * H
                 + L * (N * N * H + N * H * H + 2 * N * H * 4 * H)
                 + N * H * CP)
    transcendentals = L * N * 4 * H + N * (CP + 1)
    bytes_accessed = adj_bytes + 4 * (N * F + N * CP) + weight_bytes

    out_padded = pl.pallas_call(
        gated_gcn_kernel,
        out_shape=jax.ShapeDtypeStruct((N, CP), f32),
        in_specs=[
            _full_spec((N, F)),                                 # x
            _full_spec((N, N)),                                 # adj
            _full_spec((F, H)), _full_spec((1, H)),             # first_lin
            _full_spec((H, H)), _full_spec((1, H)),             # block-1 nn1
            _full_spec((H, H)), _full_spec((1, H)),             # block-2 nn1
            _full_spec((H, 4 * H)),                             # GRU wgi
            _full_spec((H, 4 * H)),                             # GRU wgh
            _full_spec((1, 4 * H)),                             # GRU bias
            pl.BlockSpec(memory_space=pltpu.MemorySpace.SMEM),  # fuse_weight
            _full_spec((H, CP)), _full_spec((1, CP)),           # out head (padded)
        ],
        out_specs=_full_spec((N, CP)),
        compiler_params=pltpu.CompilerParams(vmem_limit_bytes=64 * 1024 * 1024),
        cost_estimate=pl.CostEstimate(
            flops=flops, transcendentals=transcendentals, bytes_accessed=bytes_accessed),
    )(x, adj, wf, bf, wn1, bn1, wn2, bn2, wgi, wgh, bg, fuse, wo, bo)

    return out_padded[:, :C]


def init_params(key, features_num=32, hidden=32, num_class=2, num_layers=2):
    """Parameters stored in PyTorch layout (Linear.weight = [out, in])."""
    ks = jax.random.split(key, 12)
    s = 0.1
    f32 = jnp.float32
    return {
        "first_lin_w": s * jax.random.normal(ks[0], (hidden, features_num), f32),
        "first_lin_b": s * jax.random.normal(ks[1], (hidden,), f32),
        "conv1_nn1_w": s * jax.random.normal(ks[2], (hidden, hidden), f32),
        "conv1_nn1_b": s * jax.random.normal(ks[3], (hidden,), f32),
        "conv2_nn1_w": s * jax.random.normal(ks[4], (hidden, hidden), f32),
        "conv2_nn1_b": s * jax.random.normal(ks[5], (hidden,), f32),
        "rnn_w_ih": s * jax.random.normal(ks[6], (3 * hidden, hidden), f32),
        "rnn_w_hh": s * jax.random.normal(ks[7], (3 * hidden, hidden), f32),
        "rnn_b_ih": s * jax.random.normal(ks[8], (3 * hidden,), f32),
        "rnn_b_hh": s * jax.random.normal(ks[9], (3 * hidden,), f32),
        # fuse_weight initialized to 1/(num_layers+1), exactly as in the module
        "fuse": jnp.full((num_layers,), 1.0 / (num_layers + 1), f32),
        "out_w": s * jax.random.normal(ks[10], (num_class, hidden), f32),
        "out_b": s * jax.random.normal(ks[11], (num_class,), f32),
    }


def reference_forward(x, edge_index, params, num_nodes, edge_weight=None):
    """Pure-JAX reference mirroring the PyTorch forward (eval mode, res=True)."""
    f32 = jnp.float32
    src, dst = edge_index[0], edge_index[1]
    w = jnp.ones(src.shape, f32) if edge_weight is None else edge_weight.astype(f32)
    adj = jnp.zeros((num_nodes, num_nodes), f32).at[dst, src].add(w)
    H = params["first_lin_w"].shape[0]

    def sigmoid(v):
        return 1.0 / (1.0 + jnp.exp(-v))

    def gru_cell(x_in, h_prev):
        gi = x_in @ params["rnn_w_ih"].T + params["rnn_b_ih"]
        gh = h_prev @ params["rnn_w_hh"].T + params["rnn_b_hh"]
        r = sigmoid(gi[:, :H] + gh[:, :H])
        z = sigmoid(gi[:, H:2 * H] + gh[:, H:2 * H])
        n = jnp.tanh(gi[:, 2 * H:] + r * gh[:, 2 * H:])
        return (1.0 - z) * n + z * h_prev

    h = jax.nn.relu(x @ params["first_lin_w"].T + params["first_lin_b"])
    for i, blk in enumerate(("conv1", "conv2")):
        x_first = h
        h_prev = h
        agg = adj @ h
        x_in = agg @ params[f"{blk}_nn1_w"].T + params[f"{blk}_nn1_b"]
        h = gru_cell(x_in, h_prev)
        h = h + params["fuse"][i] * x_first
    logits = h @ params["out_w"].T + params["out_b"]
    return jax.nn.log_softmax(logits, axis=-1)


if __name__ == "__main__":
    N_NODES, N_EDGES, FEATURES, HIDDEN, NUM_CLASS = 32, 64, 32, 32, 2

    key = jax.random.PRNGKey(0)
    k_x, k_e, k_w, k_p = jax.random.split(key, 4)

    x = jax.random.normal(k_x, (N_NODES, FEATURES), jnp.float32)
    edge_index = jax.random.randint(k_e, (2, N_EDGES), 0, N_NODES, jnp.int32)
    edge_weight = jax.random.uniform(k_w, (N_EDGES,), jnp.float32, 0.5, 1.5)
    params = init_params(k_p, FEATURES, HIDDEN, NUM_CLASS)

    # edge_weight=None path (bf16 count adjacency)
    out = gated_gcn_forward(x, edge_index, params, num_nodes=N_NODES)
    out = jax.block_until_ready(out)
    ref = reference_forward(x, edge_index, params, N_NODES)
    assert out.shape == (N_NODES, NUM_CLASS)
    assert jnp.allclose(out, ref, atol=1e-4, rtol=1e-4), "mismatch (unweighted) vs reference"

    # weighted-edges path (f32 adjacency)
    out_w = gated_gcn_forward(x, edge_index, params, num_nodes=N_NODES,
                              edge_weight=edge_weight)
    out_w = jax.block_until_ready(out_w)
    ref_w = reference_forward(x, edge_index, params, N_NODES, edge_weight=edge_weight)
    assert jnp.allclose(out_w, ref_w, atol=1e-4, rtol=1e-4), "mismatch (weighted) vs reference"

    print("KERNEL_OK")
</pallas_src>

<mosaic_0001>
module attributes {stable_mosaic.version = 11 : i64} {
  func.func private @main(%arg0: i32) attributes {dimension_semantics = [#tpu.dimension_semantics<core_parallel>], iteration_bounds = array<i64: 2>, tpu.core_type = #tpu.core_type<sc_scalar_subcore>, window_params = []} {
    return
  }
}

module attributes {stable_mosaic.version = 11 : i64} {
  func.func private @main(%arg0: i32) attributes {dimension_semantics = [#tpu.dimension_semantics<core_parallel>], iteration_bounds = array<i64: 2>, tpu.core_type = #tpu.core_type<sc_scalar_subcore>, window_params = []} {
    return
  }
}

module attributes {stable_mosaic.version = 11 : i64} {
  func.func @gated_gcn_kernel(%arg0: memref<32x32xf32, #tpu.memory_space<vmem>>, %arg1: memref<32x32xbf16, #tpu.memory_space<vmem>>, %arg2: memref<32x32xf32, #tpu.memory_space<vmem>>, %arg3: memref<1x32xf32, #tpu.memory_space<vmem>>, %arg4: memref<32x32xf32, #tpu.memory_space<vmem>>, %arg5: memref<1x32xf32, #tpu.memory_space<vmem>>, %arg6: memref<32x32xf32, #tpu.memory_space<vmem>>, %arg7: memref<1x32xf32, #tpu.memory_space<vmem>>, %arg8: memref<32x128xf32, #tpu.memory_space<vmem>>, %arg9: memref<32x128xf32, #tpu.memory_space<vmem>>, %arg10: memref<1x128xf32, #tpu.memory_space<vmem>>, %arg11: memref<2xf32, #tpu.memory_space<smem>>, %arg12: memref<32x128xf32, #tpu.memory_space<vmem>>, %arg13: memref<1x128xf32, #tpu.memory_space<vmem>>, %arg14: memref<32x128xf32, #tpu.memory_space<vmem>>) attributes {dimension_semantics = [], scalar_prefetch = 0 : i64, scratch_operands = 0 : i64, tpu.core_type = #tpu.core_type<tc>} {
    %c0 = arith.constant 0 : index
    %c0_0 = arith.constant 0 : index
    %0 = vector.load %arg1[%c0, %c0_0] : memref<32x32xbf16, #tpu.memory_space<vmem>>, vector<32x32xbf16>
    %1 = arith.extf %0 : vector<32x32xbf16> to vector<32x32xf32>
    %c0_1 = arith.constant 0 : index
    %c0_2 = arith.constant 0 : index
    %2 = vector.load %arg0[%c0_1, %c0_2] : memref<32x32xf32, #tpu.memory_space<vmem>>, vector<32x32xf32>
    %c0_3 = arith.constant 0 : index
    %c0_4 = arith.constant 0 : index
    %3 = vector.load %arg2[%c0_3, %c0_4] : memref<32x32xf32, #tpu.memory_space<vmem>>, vector<32x32xf32>
    %cst = arith.constant dense<0.000000e+00> : vector<32x32xf32>
    %4 = tpu.matmul %2, %3, %cst {dimension_numbers = #tpu.dot_dimension_numbers<[1], [0], [0], [1], [0, 0, 1, 1], [], []>} : vector<32x32xf32>, vector<32x32xf32>, vector<32x32xf32> -> vector<32x32xf32>
    %c0_5 = arith.constant 0 : index
    %c0_6 = arith.constant 0 : index
    %5 = vector.load %arg3[%c0_5, %c0_6] : memref<1x32xf32, #tpu.memory_space<vmem>>, vector<1x32xf32>
    %6 = vector.broadcast %5 : vector<1x32xf32> to vector<32x32xf32>
    %7 = arith.addf %4, %6 : vector<32x32xf32>
    %cst_7 = arith.constant 0.000000e+00 : f32
    %8 = vector.broadcast %cst_7 : f32 to vector<32x32xf32>
    %9 = arith.maximumf %7, %8 : vector<32x32xf32>
    %c0_8 = arith.constant 0 : index
    %c0_9 = arith.constant 0 : index
    %10 = vector.load %arg8[%c0_8, %c0_9] : memref<32x128xf32, #tpu.memory_space<vmem>>, vector<32x128xf32>
    %c0_10 = arith.constant 0 : index
    %c0_11 = arith.constant 0 : index
    %11 = vector.load %arg9[%c0_10, %c0_11] : memref<32x128xf32, #tpu.memory_space<vmem>>, vector<32x128xf32>
    %c0_12 = arith.constant 0 : index
    %c0_13 = arith.constant 0 : index
    %12 = vector.load %arg10[%c0_12, %c0_13] : memref<1x128xf32, #tpu.memory_space<vmem>>, vector<1x128xf32>
    %c0_14 = arith.constant 0 : index
    %c0_15 = arith.constant 0 : index
    %13 = vector.load %arg4[%c0_14, %c0_15] : memref<32x32xf32, #tpu.memory_space<vmem>>, vector<32x32xf32>
    %c0_16 = arith.constant 0 : index
    %c0_17 = arith.constant 0 : index
    %14 = vector.load %arg5[%c0_16, %c0_17] : memref<1x32xf32, #tpu.memory_space<vmem>>, vector<1x32xf32>
    %c0_18 = arith.constant 0 : index
    %15 = memref.load %arg11[%c0_18] : memref<2xf32, #tpu.memory_space<smem>>
    %cst_19 = arith.constant dense<0.000000e+00> : vector<32x32xf32>
    %16 = tpu.matmul %1, %9, %cst_19 {dimension_numbers = #tpu.dot_dimension_numbers<[1], [0], [0], [1], [0, 0, 1, 1], [], []>} : vector<32x32xf32>, vector<32x32xf32>, vector<32x32xf32> -> vector<32x32xf32>
    %cst_20 = arith.constant dense<0.000000e+00> : vector<32x32xf32>
    %17 = tpu.matmul %16, %13, %cst_20 {dimension_numbers = #tpu.dot_dimension_numbers<[1], [0], [0], [1], [0, 0, 1, 1], [], []>} : vector<32x32xf32>, vector<32x32xf32>, vector<32x32xf32> -> vector<32x32xf32>
    %18 = vector.broadcast %14 : vector<1x32xf32> to vector<32x32xf32>
    %19 = arith.addf %17, %18 : vector<32x32xf32>
    %cst_21 = arith.constant dense<0.000000e+00> : vector<32x128xf32>
    %20 = tpu.matmul %19, %10, %cst_21 {dimension_numbers = #tpu.dot_dimension_numbers<[1], [0], [0], [1], [0, 0, 1, 1], [], []>} : vector<32x32xf32>, vector<32x128xf32>, vector<32x128xf32> -> vector<32x128xf32>
    %cst_22 = arith.constant dense<0.000000e+00> : vector<32x128xf32>
    %21 = tpu.matmul %9, %11, %cst_22 {dimension_numbers = #tpu.dot_dimension_numbers<[1], [0], [0], [1], [0, 0, 1, 1], [], []>} : vector<32x32xf32>, vector<32x128xf32>, vector<32x128xf32> -> vector<32x128xf32>
    %22 = arith.addf %20, %21 : vector<32x128xf32>
    %23 = vector.broadcast %12 : vector<1x128xf32> to vector<32x128xf32>
    %24 = arith.addf %22, %23 : vector<32x128xf32>
    %25 = vector.extract_strided_slice %24 {offsets = [0, 0], sizes = [32, 32], strides = [1, 1]} : vector<32x128xf32> to vector<32x32xf32>
    %cst_23 = arith.constant 0.000000e+00 : f32
    %26 = vector.broadcast %cst_23 : f32 to vector<32x32xf32>
    %27 = arith.subf %26, %25 : vector<32x32xf32>
    %28 = math.exp %27 : vector<32x32xf32>
    %cst_24 = arith.constant 1.000000e+00 : f32
    %29 = vector.broadcast %cst_24 : f32 to vector<32x32xf32>
    %30 = arith.addf %29, %28 : vector<32x32xf32>
    %cst_25 = arith.constant 1.000000e+00 : f32
    %31 = vector.broadcast %cst_25 : f32 to vector<32x32xf32>
    %32 = arith.divf %31, %30 : vector<32x32xf32>
    %33 = vector.extract_strided_slice %24 {offsets = [0, 32], sizes = [32, 32], strides = [1, 1]} : vector<32x128xf32> to vector<32x32xf32>
    %cst_26 = arith.constant 0.000000e+00 : f32
    %34 = vector.broadcast %cst_26 : f32 to vector<32x32xf32>
    %35 = arith.subf %34, %33 : vector<32x32xf32>
    %36 = math.exp %35 : vector<32x32xf32>
    %cst_27 = arith.constant 1.000000e+00 : f32
    %37 = vector.broadcast %cst_27 : f32 to vector<32x32xf32>
    %38 = arith.addf %37, %36 : vector<32x32xf32>
    %cst_28 = arith.constant 1.000000e+00 : f32
    %39 = vector.broadcast %cst_28 : f32 to vector<32x32xf32>
    %40 = arith.divf %39, %38 : vector<32x32xf32>
    %41 = vector.extract_strided_slice %24 {offsets = [0, 64], sizes = [32, 32], strides = [1, 1]} : vector<32x128xf32> to vector<32x32xf32>
    %42 = vector.extract_strided_slice %24 {offsets = [0, 96], sizes = [32, 32], strides = [1, 1]} : vector<32x128xf32> to vector<32x32xf32>
    %43 = arith.mulf %32, %42 : vector<32x32xf32>
    %44 = arith.addf %41, %43 : vector<32x32xf32>
    %45 = math.tanh %44 : vector<32x32xf32>
    %cst_29 = arith.constant 1.000000e+00 : f32
    %46 = vector.broadcast %cst_29 : f32 to vector<32x32xf32>
    %47 = arith.subf %46, %40 : vector<32x32xf32>
    %48 = arith.mulf %47, %45 : vector<32x32xf32>
    %49 = arith.mulf %40, %9 : vector<32x32xf32>
    %50 = arith.addf %48, %49 : vector<32x32xf32>
    %51 = vector.broadcast %15 : f32 to vector<32x32xf32>
    %52 = arith.mulf %51, %9 : vector<32x32xf32>
    %53 = arith.addf %50, %52 : vector<32x32xf32>
    %c0_30 = arith.constant 0 : index
    %c0_31 = arith.constant 0 : index
    %54 = vector.load %arg6[%c0_30, %c0_31] : memref<32x32xf32, #tpu.memory_space<vmem>>, vector<32x32xf32>
    %c0_32 = arith.constant 0 : index
    %c0_33 = arith.constant 0 : index
    %55 = vector.load %arg7[%c0_32, %c0_33] : memref<1x32xf32, #tpu.memory_space<vmem>>, vector<1x32xf32>
    %c1 = arith.constant 1 : index
    %56 = memref.load %arg11[%c1] : memref<2xf32, #tpu.memory_space<smem>>
    %cst_34 = arith.constant dense<0.000000e+00> : vector<32x32xf32>
    %57 = tpu.matmul %1, %53, %cst_34 {dimension_numbers = #tpu.dot_dimension_numbers<[1], [0], [0], [1], [0, 0, 1, 1], [], []>} : vector<32x32xf32>, vector<32x32xf32>, vector<32x32xf32> -> vector<32x32xf32>
    %cst_35 = arith.constant dense<0.000000e+00> : vector<32x32xf32>
    %58 = tpu.matmul %57, %54, %cst_35 {dimension_numbers = #tpu.dot_dimension_numbers<[1], [0], [0], [1], [0, 0, 1, 1], [], []>} : vector<32x32xf32>, vector<32x32xf32>, vector<32x32xf32> -> vector<32x32xf32>
    %59 = vector.broadcast %55 : vector<1x32xf32> to vector<32x32xf32>
    %60 = arith.addf %58, %59 : vector<32x32xf32>
    %cst_36 = arith.constant dense<0.000000e+00> : vector<32x128xf32>
    %61 = tpu.matmul %60, %10, %cst_36 {dimension_numbers = #tpu.dot_dimension_numbers<[1], [0], [0], [1], [0, 0, 1, 1], [], []>} : vector<32x32xf32>, vector<32x128xf32>, vector<32x128xf32> -> vector<32x128xf32>
    %cst_37 = arith.constant dense<0.000000e+00> : vector<32x128xf32>
    %62 = tpu.matmul %53, %11, %cst_37 {dimension_numbers = #tpu.dot_dimension_numbers<[1], [0], [0], [1], [0, 0, 1, 1], [], []>} : vector<32x32xf32>, vector<32x128xf32>, vector<32x128xf32> -> vector<32x128xf32>
    %63 = arith.addf %61, %62 : vector<32x128xf32>
    %64 = vector.broadcast %12 : vector<1x128xf32> to vector<32x128xf32>
    %65 = arith.addf %63, %64 : vector<32x128xf32>
    %66 = vector.extract_strided_slice %65 {offsets = [0, 0], sizes = [32, 32], strides = [1, 1]} : vector<32x128xf32> to vector<32x32xf32>
    %cst_38 = arith.constant 0.000000e+00 : f32
    %67 = vector.broadcast %cst_38 : f32 to vector<32x32xf32>
    %68 = arith.subf %67, %66 : vector<32x32xf32>
    %69 = math.exp %68 : vector<32x32xf32>
    %cst_39 = arith.constant 1.000000e+00 : f32
    %70 = vector.broadcast %cst_39 : f32 to vector<32x32xf32>
    %71 = arith.addf %70, %69 : vector<32x32xf32>
    %cst_40 = arith.constant 1.000000e+00 : f32
    %72 = vector.broadcast %cst_40 : f32 to vector<32x32xf32>
    %73 = arith.divf %72, %71 : vector<32x32xf32>
    %74 = vector.extract_strided_slice %65 {offsets = [0, 32], sizes = [32, 32], strides = [1, 1]} : vector<32x128xf32> to vector<32x32xf32>
    %cst_41 = arith.constant 0.000000e+00 : f32
    %75 = vector.broadcast %cst_41 : f32 to vector<32x32xf32>
    %76 = arith.subf %75, %74 : vector<32x32xf32>
    %77 = math.exp %76 : vector<32x32xf32>
    %cst_42 = arith.constant 1.000000e+00 : f32
    %78 = vector.broadcast %cst_42 : f32 to vector<32x32xf32>
    %79 = arith.addf %78, %77 : vector<32x32xf32>
    %cst_43 = arith.constant 1.000000e+00 : f32
    %80 = vector.broadcast %cst_43 : f32 to vector<32x32xf32>
    %81 = arith.divf %80, %79 : vector<32x32xf32>
    %82 = vector.extract_strided_slice %65 {offsets = [0, 64], sizes = [32, 32], strides = [1, 1]} : vector<32x128xf32> to vector<32x32xf32>
    %83 = vector.extract_strided_slice %65 {offsets = [0, 96], sizes = [32, 32], strides = [1, 1]} : vector<32x128xf32> to vector<32x32xf32>
    %84 = arith.mulf %73, %83 : vector<32x32xf32>
    %85 = arith.addf %82, %84 : vector<32x32xf32>
    %86 = math.tanh %85 : vector<32x32xf32>
    %cst_44 = arith.constant 1.000000e+00 : f32
    %87 = vector.broadcast %cst_44 : f32 to vector<32x32xf32>
    %88 = arith.subf %87, %81 : vector<32x32xf32>
    %89 = arith.mulf %88, %86 : vector<32x32xf32>
    %90 = arith.mulf %81, %53 : vector<32x32xf32>
    %91 = arith.addf %89, %90 : vector<32x32xf32>
    %92 = vector.broadcast %56 : f32 to vector<32x32xf32>
    %93 = arith.mulf %92, %53 : vector<32x32xf32>
    %94 = arith.addf %91, %93 : vector<32x32xf32>
    %c0_45 = arith.constant 0 : index
    %c0_46 = arith.constant 0 : index
    %95 = vector.load %arg12[%c0_45, %c0_46] : memref<32x128xf32, #tpu.memory_space<vmem>>, vector<32x128xf32>
    %cst_47 = arith.constant dense<0.000000e+00> : vector<32x128xf32>
    %96 = tpu.matmul %94, %95, %cst_47 {dimension_numbers = #tpu.dot_dimension_numbers<[1], [0], [0], [1], [0, 0, 1, 1], [], []>} : vector<32x32xf32>, vector<32x128xf32>, vector<32x128xf32> -> vector<32x128xf32>
    %c0_48 = arith.constant 0 : index
    %c0_49 = arith.constant 0 : index
    %97 = vector.load %arg13[%c0_48, %c0_49] : memref<1x128xf32, #tpu.memory_space<vmem>>, vector<1x128xf32>
    %98 = vector.broadcast %97 : vector<1x128xf32> to vector<32x128xf32>
    %99 = arith.addf %96, %98 : vector<32x128xf32>
    %cst_50 = arith.constant dense<0xFF800000> : vector<32xf32>
    %100 = vector.multi_reduction <maximumf>, %99, %cst_50 [1] : vector<32x128xf32> to vector<32xf32>
    %101 = vector.shape_cast %100 : vector<32xf32> to vector<32x1xf32>
    %102 = vector.broadcast %101 : vector<32x1xf32> to vector<32x128xf32>
    %103 = arith.subf %99, %102 : vector<32x128xf32>
    %104 = math.exp %103 : vector<32x128xf32>
    %cst_51 = arith.constant dense<0.000000e+00> : vector<32xf32>
    %105 = vector.multi_reduction <add>, %104, %cst_51 [1] : vector<32x128xf32> to vector<32xf32>
    %106 = vector.shape_cast %105 : vector<32xf32> to vector<32x1xf32>
    %107 = math.log %106 : vector<32x1xf32>
    %108 = vector.broadcast %107 : vector<32x1xf32> to vector<32x128xf32>
    %109 = arith.subf %103, %108 : vector<32x128xf32>
    %c0_52 = arith.constant 0 : index
    %c0_53 = arith.constant 0 : index
    %110 = vector.load %arg14[%c0_52, %c0_53] : memref<32x128xf32, #tpu.memory_space<vmem>>, vector<32x128xf32>
    tpu.vector_store %arg14[%c0_52, %c0_53], %109 {strides = array<i32>} : memref<32x128xf32, #tpu.memory_space<vmem>>, vector<32x128xf32>,
    return
  }
}

</mosaic_0001>

<llo_original>
// kernel: gated_gcn_forward.1
$region0: #{gated_gcn_forward.1}
  #allocation0 [shape = 'u32[]', space=smem, size = 0x4, offset = 0x4, fixed_abs, tag = 'smem constant byte address 0x4 - core index']
  #allocation1 [shape = 'u32[144,128]{1,0:T(1,128)}', space=vmem, size = 0x12000, scoped, tag = 'internal scratch']
  %s0 = inlined_call_operand.vmem [shape: f32[32,32], index: 0, kind: input, shape index: {}]
  %s1 = inlined_call_operand.vmem [shape: bf16[32,32], index: 1, kind: input, shape index: {}]
  %s2 = inlined_call_operand.vmem [shape: f32[32,32], index: 2, kind: input, shape index: {}]
  %s3 = inlined_call_operand.vmem [shape: f32[1,32], index: 3, kind: input, shape index: {}]
  %s4 = inlined_call_operand.vmem [shape: f32[32,32], index: 4, kind: input, shape index: {}]
  %s5 = inlined_call_operand.vmem [shape: f32[1,32], index: 5, kind: input, shape index: {}]
  %s6 = inlined_call_operand.vmem [shape: f32[32,32], index: 6, kind: input, shape index: {}]
  %s7 = inlined_call_operand.vmem [shape: f32[1,32], index: 7, kind: input, shape index: {}]
  %s8 = inlined_call_operand.vmem [shape: f32[32,128], index: 8, kind: input, shape index: {}]
  %s9 = inlined_call_operand.vmem [shape: f32[32,128], index: 9, kind: input, shape index: {}]
  %s10 = inlined_call_operand.vmem [shape: f32[1,128], index: 10, kind: input, shape index: {}]
  %s11 = inlined_call_operand.vmem [shape: f32[2], index: 11, kind: input, shape index: {}]
  %s12 = inlined_call_operand.vmem [shape: f32[32,128], index: 12, kind: input, shape index: {}]
  %s13 = inlined_call_operand.vmem [shape: f32[1,128], index: 13, kind: input, shape index: {}]
  %s14 = inlined_call_operand.vmem [shape: f32[32,128], index: 14, kind: output, shape index: {}]
  %s15 = sld [smem:[#allocation0]]
  $region70: #{gated_gcn_forward.1} parent=0
    _
  %s17 = ssub.s32 1, %s15
  %s18 = scalar_select 0, %s17, %s15
  $region1: #{gated_gcn_forward.1} parent=0
    #allocation2 [shape = 'u8[512]{0}', space=smem, size = 0x200, scoped, tag = 'input window, operand 11, single buffered']
    #allocation3 [shape = 's32[1]{0}', space=sflag, size = 0x4, scoped, tag = 'scoped memory for gated_gcn_forward.1']
    %19 = vsyncpa [#allocation3], 0
    // Predicated region
    $region2: #{gated_gcn_forward.1} parent=1 // pred_check
      _
    $region3: #{gated_gcn_forward.1} parent=1 // pred_check_branch
      %21 = sbr.rel (0) target = $region5
    $region4: #{gated_gcn_forward.1} parent=1 // pred_region
      _
    $region5: #{gated_gcn_forward.1} parent=1 // pred_fallthru
      _
    // Predicated region
    $region6: #{gated_gcn_forward.1} parent=1 // pred_check
      _
    $region7: #{gated_gcn_forward.1} parent=1 // pred_check_branch
      %23 = sbr.rel (0) target = $region9
    $region8: #{gated_gcn_forward.1} parent=1 // pred_region
      _
    $region9: #{gated_gcn_forward.1} parent=1 // pred_fallthru
      _
    // Predicated region
    $region10: #{gated_gcn_forward.1} parent=1 // pred_check
      _
    $region11: #{gated_gcn_forward.1} parent=1 // pred_check_branch
      %25 = sbr.rel (0) target = $region13
    $region12: #{gated_gcn_forward.1} parent=1 // pred_region
      _
    $region13: #{gated_gcn_forward.1} parent=1 // pred_fallthru
      _
    // Predicated region
    $region14: #{gated_gcn_forward.1} parent=1 // pred_check
      _
    $region15: #{gated_gcn_forward.1} parent=1 // pred_check_branch
      %27 = sbr.rel (0) target = $region17
    $region16: #{gated_gcn_forward.1} parent=1 // pred_region
      _
    $region17: #{gated_gcn_forward.1} parent=1 // pred_fallthru
      _
    // Predicated region
    $region18: #{gated_gcn_forward.1} parent=1 // pred_check
      _
    $region19: #{gated_gcn_forward.1} parent=1 // pred_check_branch
      %29 = sbr.rel (0) target = $region21
    $region20: #{gated_gcn_forward.1} parent=1 // pred_region
      _
    $region21: #{gated_gcn_forward.1} parent=1 // pred_fallthru
      _
    // Predicated region
    $region22: #{gated_gcn_forward.1} parent=1 // pred_check
      _
    $region23: #{gated_gcn_forward.1} parent=1 // pred_check_branch
      %31 = sbr.rel (0) target = $region25
    $region24: #{gated_gcn_forward.1} parent=1 // pred_region
      _
    $region25: #{gated_gcn_forward.1} parent=1 // pred_fallthru
      _
    // Predicated region
    $region26: #{gated_gcn_forward.1} parent=1 // pred_check
      _
    $region27: #{gated_gcn_forward.1} parent=1 // pred_check_branch
      %33 = sbr.rel (0) target = $region29
    $region28: #{gated_gcn_forward.1} parent=1 // pred_region
      _
    $region29: #{gated_gcn_forward.1} parent=1 // pred_fallthru
      _
    // Predicated region
    $region30: #{gated_gcn_forward.1} parent=1 // pred_check
      _
    $region31: #{gated_gcn_forward.1} parent=1 // pred_check_branch
      %35 = sbr.rel (0) target = $region33
    $region32: #{gated_gcn_forward.1} parent=1 // pred_region
      _
    $region33: #{gated_gcn_forward.1} parent=1 // pred_fallthru
      _
    // Predicated region
    $region34: #{gated_gcn_forward.1} parent=1 // pred_check
      _
    $region35: #{gated_gcn_forward.1} parent=1 // pred_check_branch
      %37 = sbr.rel (0) target = $region37
    $region36: #{gated_gcn_forward.1} parent=1 // pred_region
      _
    $region37: #{gated_gcn_forward.1} parent=1 // pred_fallthru
      _
    // Predicated region
    $region38: #{gated_gcn_forward.1} parent=1 // pred_check
      _
    $region39: #{gated_gcn_forward.1} parent=1 // pred_check_branch
      %39 = sbr.rel (0) target = $region41
    $region40: #{gated_gcn_forward.1} parent=1 // pred_region
      _
    $region41: #{gated_gcn_forward.1} parent=1 // pred_fallthru
      _
    // Predicated region
    $region42: #{gated_gcn_forward.1} parent=1 // pred_check
      _
    $region43: #{gated_gcn_forward.1} parent=1 // pred_check_branch
      %41 = sbr.rel (0) target = $region45
    $region44: #{gated_gcn_forward.1} parent=1 // pred_region
      _
    $region45: #{gated_gcn_forward.1} parent=1 // pred_fallthru
      _
    // Predicated region
    $region46: #{gated_gcn_forward.1} parent=1 // pred_check
      _
    $region47: #{gated_gcn_forward.1} parent=1 // pred_check_branch
      %43 = sbr.rel (0) target = $region49
    $region48: #{gated_gcn_forward.1} parent=1 // pred_region
      %s45 = ssub.s32 16, 16
      %46 = vsyncadd [#allocation3], %s45
      %s48 = sshll.u32 %s11, 4
      %s49 = int_to_ptr.vmem [resolvable:$true] %s48
      %51 = dma.vmem_to_smem %s49, 16, [#allocation2], [#allocation3]
    $region49: #{gated_gcn_forward.1} parent=1 // pred_fallthru
      _
    // Predicated region
    $region50: #{gated_gcn_forward.1} parent=1 // pred_check
      _
    $region51: #{gated_gcn_forward.1} parent=1 // pred_check_branch
      %53 = sbr.rel (0) target = $region53
    $region52: #{gated_gcn_forward.1} parent=1 // pred_region
      _
    $region53: #{gated_gcn_forward.1} parent=1 // pred_fallthru
      _
    // Predicated region
    $region54: #{gated_gcn_forward.1} parent=1 // pred_check
      _
    $region55: #{gated_gcn_forward.1} parent=1 // pred_check_branch
      %55 = sbr.rel (0) target = $region57
    $region56: #{gated_gcn_forward.1} parent=1 // pred_region
      _
    $region57: #{gated_gcn_forward.1} parent=1 // pred_fallthru
      _
    // Predicated region
    $region58: #{gated_gcn_forward.1} parent=1 // pred_check
      _
    $region59: #{gated_gcn_forward.1} parent=1 // pred_check_branch
      %57 = sbr.rel (0) target = $region61
    $region60: #{gated_gcn_forward.1} parent=1 // pred_region
      %58 = dma.done [#allocation3], 16
    $region61: #{gated_gcn_forward.1} parent=1 // pred_fallthru
      _
    %59 = sfence
    %v60 = vld [vmem:[%s1] sm:$0xf]
    %v61 = vld [vmem:[%s1 + $0x4] sm:$0xf]
    %v62 = vld [vmem:[%s1 + $0x8] sm:$0xf]
    %v63 = vld [vmem:[%s1 + $0xc] sm:$0xf]
    %v64 = vunpack.c.l.bf16 %v60
    %v65 = vunpack.c.l.bf16 %v61
    %v66 = vunpack.c.l.bf16 %v62
    %v67 = vunpack.c.l.bf16 %v63
    %v68 = vld [vmem:[%s0] sm:$0xff]
    %v69 = vld [vmem:[%s0 + $0x8] sm:$0xff]
    %v70 = vld [vmem:[%s0 + $0x10] sm:$0xff]
    %v71 = vld [vmem:[%s0 + $0x18] sm:$0xff]
    %v72 = vld [vmem:[%s2] sm:$0xff]
    %v73 = vld [vmem:[%s2 + $0x8] sm:$0xff]
    %v74 = vld [vmem:[%s2 + $0x10] sm:$0xff]
    %v75 = vld [vmem:[%s2 + $0x18] sm:$0xff]
    %v76 = vld [vmem:[%s3] sm:$0x1]
    %v78 = vlaneseq
    %v79 = vshrl.u32 %v78, 7
    %v80 = vsub.s32 0, %v79
    %v81 = vrot.slane %v76, %v80
    %vm83 = vcmask 261120
    %v85 = vsel %vm83, %v68, 0
    %v88 = vsel %vm83, %v69, 0
    %v91 = vsel %vm83, %v70, 0
    %v94 = vsel %vm83, %v71, 0
    %96 = vmatprep.subr.mxu0 0.0
    %97 = vmatpush1.msra.mxu0 0.0
    %98 = vmatprep.subr.mxu0 0.0
    %99 = vmatpush1.msra.mxu0 0.0
    %100 = vmatprep.subr.mxu0 0.0
    %101 = vmatpush1.msra.mxu0 0.0
    %102 = vmatprep.subr.mxu0 0.0
    %103 = vmatpush1.msra.mxu0 0.0
    %104 = vmatprep.subr.mxu0 0.0
    %105 = vmatpush1.msra.mxu0 0.0
    %106 = vmatprep.subr.mxu0 0.0
    %107 = vmatpush1.msra.mxu0 0.0
    %108 = vmatprep.subr.mxu0 0.0
    %109 = vmatpush1.msra.mxu0 0.0
    %110 = vmatprep.subr.mxu0 0.0
    %111 = vmatpush1.msra.mxu0 0.0
    %112 = vmatprep.subr.mxu0 0.0
    %113 = vmatpush1.msra.mxu0 0.0
    %114 = vmatprep.subr.mxu0 0.0
    %115 = vmatpush1.msra.mxu0 0.0
    %116 = vmatprep.subr.mxu0 0.0
    %117 = vmatpush1.msra.mxu0 0.0
    %118 = vmatprep.subr.mxu0 0.0
    %119 = vmatpush1.msra.mxu0 0.0
    %120 = vmatprep.subr.mxu0 0.0
    %121 = vmatpush1.msra.mxu0 %v75
    %122 = vmatprep.subr.mxu0 0.0
    %123 = vmatpush1.msra.mxu0 %v74
    %124 = vmatprep.subr.mxu0 0.0
    %125 = vmatpush1.msra.mxu0 %v73
    %126 = vmatprep.subr.mxu0 0.0
    %127 = vmatpush1.msra.mxu0 %v72
    %128 = vmatprep.subr.mxu0 0.0
    %129 = vmatpush2.msra.mxu0 0.0
    %130 = vmatprep.subr.mxu0 0.0
    %131 = vmatpush2.msra.mxu0 0.0
    %132 = vmatprep.subr.mxu0 0.0
    %133 = vmatpush2.msra.mxu0 0.0
    %134 = vmatprep.subr.mxu0 0.0
    %135 = vmatpush2.msra.mxu0 0.0
    %136 = vmatprep.subr.mxu0 0.0
    %137 = vmatpush2.msra.mxu0 0.0
    %138 = vmatprep.subr.mxu0 0.0
    %139 = vmatpush2.msra.mxu0 0.0
    %140 = vmatprep.subr.mxu0 0.0
    %141 = vmatpush2.msra.mxu0 0.0
    %142 = vmatprep.subr.mxu0 0.0
    %143 = vmatpush2.msra.mxu0 0.0
    %144 = vmatprep.subr.mxu0 0.0
    %145 = vmatpush2.msra.mxu0 0.0
    %146 = vmatprep.subr.mxu0 0.0
    %147 = vmatpush2.msra.mxu0 0.0
    %148 = vmatprep.subr.mxu0 0.0
    %149 = vmatpush2.msra.mxu0 0.0
    %150 = vmatprep.subr.mxu0 0.0
    %151 = vmatpush2.msra.mxu0 0.0
    %152 = vmatprep.subr.mxu0 0.0
    %153 = vmatpush2.msra.mxu0 0.0
    %154 = vmatprep.subr.mxu0 0.0
    %155 = vmatpush2.msra.mxu0 0.0
    %156 = vmatprep.subr.mxu0 0.0
    %157 = vmatpush2.msra.mxu0 0.0
    %158 = vmatprep.subr.mxu0 0.0
    %159 = vmatpush2.msra.mxu0 0.0
    %160 = vmatprep.mubr.f32.mxu0 0.0
    %161 = vmatmul.mubr.f32.gmra.mxu0 %v85
    %v162 = vpop.f32.mrf.mxu0
    %v163 = vadd.f32 %v81, %v162
    %v164 = vpop.f32.mrf.mxu0
    %165 = vmatprep.mubr.f32.mxu0 0.0
    %166 = vmatmul.mubr.f32.gmra.mxu0 %v88
    %v167 = vpop.f32.mrf.mxu0
    %v168 = vadd.f32 %v81, %v167
    %v169 = vpop.f32.mrf.mxu0
    %170 = vmatprep.mubr.f32.mxu0 0.0
    %171 = vmatmul.mubr.f32.gmra.mxu0 %v91
    %v172 = vpop.f32.mrf.mxu0
    %v173 = vadd.f32 %v81, %v172
    %v174 = vpop.f32.mrf.mxu0
    %175 = vmatprep.mubr.f32.mxu0 0.0
    %176 = vmatmul.mubr.f32.gmra.mxu0 %v94
    %v177 = vpop.f32.mrf.mxu0
    %v178 = vadd.f32 %v81, %v177
    %v179 = vpop.f32.mrf.mxu0
    %180 = vdwg.mxu0
    %v181 = vmax.f32 %v163, 0.0
    %v182 = vmax.f32 %v168, 0.0
    %v183 = vmax.f32 %v173, 0.0
    %v184 = vmax.f32 %v178, 0.0
    %v185 = vld [vmem:[%s8] sm:$0xff]
    %v186 = vld [vmem:[%s8 + $0x8] sm:$0xff]
    %v187 = vld [vmem:[%s8 + $0x10] sm:$0xff]
    %v188 = vld [vmem:[%s8 + $0x18] sm:$0xff]
    %v189 = vld [vmem:[%s9] sm:$0xff]
    %v190 = vld [vmem:[%s9 + $0x8] sm:$0xff]
    %v191 = vld [vmem:[%s9 + $0x10] sm:$0xff]
    %v192 = vld [vmem:[%s9 + $0x18] sm:$0xff]
    %v193 = vld [vmem:[%s10] sm:$0x1]
    %v194 = vld [vmem:[%s4] sm:$0xff]
    %v195 = vld [vmem:[%s4 + $0x8] sm:$0xff]
    %v196 = vld [vmem:[%s4 + $0x10] sm:$0xff]
    %v197 = vld [vmem:[%s4 + $0x18] sm:$0xff]
    %v198 = vld [vmem:[%s5] sm:$0x1]
    %s199 = sld [smem:[#allocation2]]
    %v201 = vsel %vm83, %v64, 0
    %v204 = vsel %vm83, %v65, 0
    %v207 = vsel %vm83, %v66, 0
    %v210 = vsel %vm83, %v67, 0
    %212 = vmatprep.subr.mxu0 0.0
    %213 = vmatpush1.msra.mxu0 0.0
    %214 = vmatprep.subr.mxu0 0.0
    %215 = vmatpush1.msra.mxu0 0.0
    %216 = vmatprep.subr.mxu0 0.0
    %217 = vmatpush1.msra.mxu0 0.0
    %218 = vmatprep.subr.mxu0 0.0
    %219 = vmatpush1.msra.mxu0 0.0
    %220 = vmatprep.subr.mxu0 0.0
    %221 = vmatpush1.msra.mxu0 0.0
    %222 = vmatprep.subr.mxu0 0.0
    %223 = vmatpush1.msra.mxu0 0.0
    %224 = vmatprep.subr.mxu0 0.0
    %225 = vmatpush1.msra.mxu0 0.0
    %226 = vmatprep.subr.mxu0 0.0
    %227 = vmatpush1.msra.mxu0 0.0
    %228 = vmatprep.subr.mxu0 0.0
    %229 = vmatpush1.msra.mxu0 0.0
    %230 = vmatprep.subr.mxu0 0.0
    %231 = vmatpush1.msra.mxu0 0.0
    %232 = vmatprep.subr.mxu0 0.0
    %233 = vmatpush1.msra.mxu0 0.0
    %234 = vmatprep.subr.mxu0 0.0
    %235 = vmatpush1.msra.mxu0 0.0
    %236 = vmatprep.subr.mxu0 0.0
    %237 = vmatpush1.msra.mxu0 %v184
    %238 = vmatprep.subr.mxu0 0.0
    %239 = vmatpush1.msra.mxu0 %v183
    %240 = vmatprep.subr.mxu0 0.0
    %241 = vmatpush1.msra.mxu0 %v182
    %242 = vmatprep.subr.mxu0 0.0
    %243 = vmatpush1.msra.mxu0 %v181
    %244 = vmatprep.subr.mxu0 0.0
    %245 = vmatpush2.msra.mxu0 0.0
    %246 = vmatprep.subr.mxu0 0.0
    %247 = vmatpush2.msra.mxu0 0.0
    %248 = vmatprep.subr.mxu0 0.0
    %249 = vmatpush2.msra.mxu0 0.0
    %250 = vmatprep.subr.mxu0 0.0
    %251 = vmatpush2.msra.mxu0 0.0
    %252 = vmatprep.subr.mxu0 0.0
    %253 = vmatpush2.msra.mxu0 0.0
    %254 = vmatprep.subr.mxu0 0.0
    %255 = vmatpush2.msra.mxu0 0.0
    %256 = vmatprep.subr.mxu0 0.0
    %257 = vmatpush2.msra.mxu0 0.0
    %258 = vmatprep.subr.mxu0 0.0
    %259 = vmatpush2.msra.mxu0 0.0
    %260 = vmatprep.subr.mxu0 0.0
    %261 = vmatpush2.msra.mxu0 0.0
    %262 = vmatprep.subr.mxu0 0.0
    %263 = vmatpush2.msra.mxu0 0.0
    %264 = vmatprep.subr.mxu0 0.0
    %265 = vmatpush2.msra.mxu0 0.0
    %266 = vmatprep.subr.mxu0 0.0
    %267 = vmatpush2.msra.mxu0 0.0
    %268 = vmatprep.subr.mxu0 0.0
    %269 = vmatpush2.msra.mxu0 0.0
    %270 = vmatprep.subr.mxu0 0.0
    %271 = vmatpush2.msra.mxu0 0.0
    %272 = vmatprep.subr.mxu0 0.0
    %273 = vmatpush2.msra.mxu0 0.0
    %274 = vmatprep.subr.mxu0 0.0
    %275 = vmatpush2.msra.mxu0 0.0
    %276 = vmatprep.mubr.f32.mxu0 0.0
    %277 = vmatmul.mubr.f32.gmra.mxu0 %v201
    %v278 = vpop.f32.mrf.mxu0
    %v279 = vadd.f32 0.0, %v278
    %v280 = vpop.f32.mrf.mxu0
    %281 = vmatprep.mubr.f32.mxu0 0.0
    %282 = vmatmul.mubr.f32.gmra.mxu0 %v204
    %v283 = vpop.f32.mrf.mxu0
    %v284 = vadd.f32 0.0, %v283
    %v285 = vpop.f32.mrf.mxu0
    %286 = vmatprep.mubr.f32.mxu0 0.0
    %287 = vmatmul.mubr.f32.gmra.mxu0 %v207
    %v288 = vpop.f32.mrf.mxu0
    %v289 = vadd.f32 0.0, %v288
    %v290 = vpop.f32.mrf.mxu0
    %291 = vmatprep.mubr.f32.mxu0 0.0
    %292 = vmatmul.mubr.f32.gmra.mxu0 %v210
    %v293 = vpop.f32.mrf.mxu0
    %v294 = vadd.f32 0.0, %v293
    %v295 = vpop.f32.mrf.mxu0
    %296 = vdwg.mxu0
    %v298 = vlaneseq
    %v299 = vshrl.u32 %v298, 7
    %v300 = vsub.s32 0, %v299
    %v301 = vrot.slane %v198, %v300
    %v304 = vsel %vm83, %v279, 0
    %v307 = vsel %vm83, %v284, 0
    %v310 = vsel %vm83, %v289, 0
    %v313 = vsel %vm83, %v294, 0
    %315 = vmatprep.subr.mxu0 0.0
    %316 = vmatpush1.msra.mxu0 0.0
    %317 = vmatprep.subr.mxu0 0.0
    %318 = vmatpush1.msra.mxu0 0.0
    %319 = vmatprep.subr.mxu0 0.0
    %320 = vmatpush1.msra.mxu0 0.0
    %321 = vmatprep.subr.mxu0 0.0
    %322 = vmatpush1.msra.mxu0 0.0
    %323 = vmatprep.subr.mxu0 0.0
    %324 = vmatpush1.msra.mxu0 0.0
    %325 = vmatprep.subr.mxu0 0.0
    %326 = vmatpush1.msra.mxu0 0.0
    %327 = vmatprep.subr.mxu0 0.0
    %328 = vmatpush1.msra.mxu0 0.0
    %329 = vmatprep.subr.mxu0 0.0
    %330 = vmatpush1.msra.mxu0 0.0
    %331 = vmatprep.subr.mxu0 0.0
    %332 = vmatpush1.msra.mxu0 0.0
    %333 = vmatprep.subr.mxu0 0.0
    %334 = vmatpush1.msra.mxu0 0.0
    %335 = vmatprep.subr.mxu0 0.0
    %336 = vmatpush1.msra.mxu0 0.0
    %337 = vmatprep.subr.mxu0 0.0
    %338 = vmatpush1.msra.mxu0 0.0
    %339 = vmatprep.subr.mxu0 0.0
    %340 = vmatpush1.msra.mxu0 %v197
    %341 = vmatprep.subr.mxu0 0.0
    %342 = vmatpush1.msra.mxu0 %v196
    %343 = vmatprep.subr.mxu0 0.0
    %344 = vmatpush1.msra.mxu0 %v195
    %345 = vmatprep.subr.mxu0 0.0
    %346 = vmatpush1.msra.mxu0 %v194
    %347 = vmatprep.subr.mxu0 0.0
    %348 = vmatpush2.msra.mxu0 0.0
    %349 = vmatprep.subr.mxu0 0.0
    %350 = vmatpush2.msra.mxu0 0.0
    %351 = vmatprep.subr.mxu0 0.0
    %352 = vmatpush2.msra.mxu0 0.0
    %353 = vmatprep.subr.mxu0 0.0
    %354 = vmatpush2.msra.mxu0 0.0
    %355 = vmatprep.subr.mxu0 0.0
    %356 = vmatpush2.msra.mxu0 0.0
    %357 = vmatprep.subr.mxu0 0.0
    %358 = vmatpush2.msra.mxu0 0.0
    %359 = vmatprep.subr.mxu0 0.0
    %360 = vmatpush2.msra.mxu0 0.0
    %361 = vmatprep.subr.mxu0 0.0
    %362 = vmatpush2.msra.mxu0 0.0
    %363 = vmatprep.subr.mxu0 0.0
    %364 = vmatpush2.msra.mxu0 0.0
    %365 = vmatprep.subr.mxu0 0.0
    %366 = vmatpush2.msra.mxu0 0.0
    %367 = vmatprep.subr.mxu0 0.0
    %368 = vmatpush2.msra.mxu0 0.0
    %369 = vmatprep.subr.mxu0 0.0
    %370 = vmatpush2.msra.mxu0 0.0
    %371 = vmatprep.subr.mxu0 0.0
    %372 = vmatpush2.msra.mxu0 0.0
    %373 = vmatprep.subr.mxu0 0.0
    %374 = vmatpush2.msra.mxu0 0.0
    %375 = vmatprep.subr.mxu0 0.0
    %376 = vmatpush2.msra.mxu0 0.0
    %377 = vmatprep.subr.mxu0 0.0
    %378 = vmatpush2.msra.mxu0 0.0
    %379 = vmatprep.mubr.f32.mxu0 0.0
    %380 = vmatmul.mubr.f32.gmra.mxu0 %v304
    %v381 = vpop.f32.mrf.mxu0
    %v382 = vadd.f32 %v301, %v381
    %v383 = vpop.f32.mrf.mxu0
    %384 = vmatprep.mubr.f32.mxu0 0.0
    %385 = vmatmul.mubr.f32.gmra.mxu0 %v307
    %v386 = vpop.f32.mrf.mxu0
    %v387 = vadd.f32 %v301, %v386
    %v388 = vpop.f32.mrf.mxu0
    %389 = vmatprep.mubr.f32.mxu0 0.0
    %390 = vmatmul.mubr.f32.gmra.mxu0 %v310
    %v391 = vpop.f32.mrf.mxu0
    %v392 = vadd.f32 %v301, %v391
    %v393 = vpop.f32.mrf.mxu0
    %394 = vmatprep.mubr.f32.mxu0 0.0
    %395 = vmatmul.mubr.f32.gmra.mxu0 %v313
    %v396 = vpop.f32.mrf.mxu0
    %v397 = vadd.f32 %v301, %v396
    %v398 = vpop.f32.mrf.mxu0
    %399 = vdwg.mxu0
    %v401 = vsel %vm83, %v181, 0
    %v404 = vsel %vm83, %v182, 0
    %v407 = vsel %vm83, %v183, 0
    %v410 = vsel %vm83, %v184, 0
    %412 = vmatprep.subr.mxu0 0.0
    %413 = vmatpush1.msra.mxu0 0.0
    %414 = vmatprep.subr.mxu0 0.0
    %415 = vmatpush1.msra.mxu0 0.0
    %416 = vmatprep.subr.mxu0 0.0
    %417 = vmatpush1.msra.mxu0 0.0
    %418 = vmatprep.subr.mxu0 0.0
    %419 = vmatpush1.msra.mxu0 0.0
    %420 = vmatprep.subr.mxu0 0.0
    %421 = vmatpush1.msra.mxu0 0.0
    %422 = vmatprep.subr.mxu0 0.0
    %423 = vmatpush1.msra.mxu0 0.0
    %424 = vmatprep.subr.mxu0 0.0
    %425 = vmatpush1.msra.mxu0 0.0
    %426 = vmatprep.subr.mxu0 0.0
    %427 = vmatpush1.msra.mxu0 0.0
    %428 = vmatprep.subr.mxu0 0.0
    %429 = vmatpush1.msra.mxu0 0.0
    %430 = vmatprep.subr.mxu0 0.0
    %431 = vmatpush1.msra.mxu0 0.0
    %432 = vmatprep.subr.mxu0 0.0
    %433 = vmatpush1.msra.mxu0 0.0
    %434 = vmatprep.subr.mxu0 0.0
    %435 = vmatpush1.msra.mxu0 0.0
    %436 = vmatprep.subr.mxu0 0.0
    %437 = vmatpush1.msra.mxu0 %v192
    %438 = vmatprep.subr.mxu0 0.0
    %439 = vmatpush1.msra.mxu0 %v191
    %440 = vmatprep.subr.mxu0 0.0
    %441 = vmatpush1.msra.mxu0 %v190
    %442 = vmatprep.subr.mxu0 0.0
    %443 = vmatpush1.msra.mxu0 %v189
    %444 = vmatprep.subr.mxu0 0.0
    %445 = vmatpush2.msra.mxu0 0.0
    %446 = vmatprep.subr.mxu0 0.0
    %447 = vmatpush2.msra.mxu0 0.0
    %448 = vmatprep.subr.mxu0 0.0
    %449 = vmatpush2.msra.mxu0 0.0
    %450 = vmatprep.subr.mxu0 0.0
    %451 = vmatpush2.msra.mxu0 0.0
    %452 = vmatprep.subr.mxu0 0.0
    %453 = vmatpush2.msra.mxu0 0.0
    %454 = vmatprep.subr.mxu0 0.0
    %455 = vmatpush2.msra.mxu0 0.0
    %456 = vmatprep.subr.mxu0 0.0
    %457 = vmatpush2.msra.mxu0 0.0
    %458 = vmatprep.subr.mxu0 0.0
    %459 = vmatpush2.msra.mxu0 0.0
    %460 = vmatprep.subr.mxu0 0.0
    %461 = vmatpush2.msra.mxu0 0.0
    %462 = vmatprep.subr.mxu0 0.0
    %463 = vmatpush2.msra.mxu0 0.0
    %464 = vmatprep.subr.mxu0 0.0
    %465 = vmatpush2.msra.mxu0 0.0
    %466 = vmatprep.subr.mxu0 0.0
    %467 = vmatpush2.msra.mxu0 0.0
    %468 = vmatprep.subr.mxu0 0.0
    %469 = vmatpush2.msra.mxu0 0.0
    %470 = vmatprep.subr.mxu0 0.0
    %471 = vmatpush2.msra.mxu0 0.0
    %472 = vmatprep.subr.mxu0 0.0
    %473 = vmatpush2.msra.mxu0 0.0
    %474 = vmatprep.subr.mxu0 0.0
    %475 = vmatpush2.msra.mxu0 0.0
    %476 = vmatprep.mubr.f32.mxu0 0.0
    %477 = vmatmul.mubr.f32.gmra.mxu0 %v401
    %v478 = vpop.f32.mrf.mxu0
    %v479 = vadd.f32 0.0, %v478
    %v480 = vpop.f32.mrf.mxu0
    %481 = vmatprep.mubr.f32.mxu0 0.0
    %482 = vmatmul.mubr.f32.gmra.mxu0 %v404
    %v483 = vpop.f32.mrf.mxu0
    %v484 = vadd.f32 0.0, %v483
    %v485 = vpop.f32.mrf.mxu0
    %486 = vmatprep.mubr.f32.mxu0 0.0
    %487 = vmatmul.mubr.f32.gmra.mxu0 %v407
    %v488 = vpop.f32.mrf.mxu0
    %v489 = vadd.f32 0.0, %v488
    %v490 = vpop.f32.mrf.mxu0
    %491 = vmatprep.mubr.f32.mxu0 0.0
    %492 = vmatmul.mubr.f32.gmra.mxu0 %v410
    %v493 = vpop.f32.mrf.mxu0
    %v494 = vadd.f32 0.0, %v493
    %v495 = vpop.f32.mrf.mxu0
    %496 = vdwg.mxu0
    %v498 = vsel %vm83, %v382, 0
    %v501 = vsel %vm83, %v387, 0
    %v504 = vsel %vm83, %v392, 0
    %v507 = vsel %vm83, %v397, 0
    %509 = vmatprep.subr.mxu0 0.0
    %510 = vmatpush1.msra.mxu0 0.0
    %511 = vmatprep.subr.mxu0 0.0
    %512 = vmatpush1.msra.mxu0 0.0
    %513 = vmatprep.subr.mxu0 0.0
    %514 = vmatpush1.msra.mxu0 0.0
    %515 = vmatprep.subr.mxu0 0.0
    %516 = vmatpush1.msra.mxu0 0.0
    %517 = vmatprep.subr.mxu0 0.0
    %518 = vmatpush1.msra.mxu0 0.0
    %519 = vmatprep.subr.mxu0 0.0
    %520 = vmatpush1.msra.mxu0 0.0
    %521 = vmatprep.subr.mxu0 0.0
    %522 = vmatpush1.msra.mxu0 0.0
    %523 = vmatprep.subr.mxu0 0.0
    %524 = vmatpush1.msra.mxu0 0.0
    %525 = vmatprep.subr.mxu0 0.0
    %526 = vmatpush1.msra.mxu0 0.0
    %527 = vmatprep.subr.mxu0 0.0
    %528 = vmatpush1.msra.mxu0 0.0
    %529 = vmatprep.subr.mxu0 0.0
    %530 = vmatpush1.msra.mxu0 0.0
    %531 = vmatprep.subr.mxu0 0.0
    %532 = vmatpush1.msra.mxu0 0.0
    %533 = vmatprep.subr.mxu0 0.0
    %534 = vmatpush1.msra.mxu0 %v188
    %535 = vmatprep.subr.mxu0 0.0
    %536 = vmatpush1.msra.mxu0 %v187
    %537 = vmatprep.subr.mxu0 0.0
    %538 = vmatpush1.msra.mxu0 %v186
    %539 = vmatprep.subr.mxu0 0.0
    %540 = vmatpush1.msra.mxu0 %v185
    %541 = vmatprep.subr.mxu0 0.0
    %542 = vmatpush2.msra.mxu0 0.0
    %543 = vmatprep.subr.mxu0 0.0
    %544 = vmatpush2.msra.mxu0 0.0
    %545 = vmatprep.subr.mxu0 0.0
    %546 = vmatpush2.msra.mxu0 0.0
    %547 = vmatprep.subr.mxu0 0.0
    %548 = vmatpush2.msra.mxu0 0.0
    %549 = vmatprep.subr.mxu0 0.0
    %550 = vmatpush2.msra.mxu0 0.0
    %551 = vmatprep.subr.mxu0 0.0
    %552 = vmatpush2.msra.mxu0 0.0
    %553 = vmatprep.subr.mxu0 0.0
    %554 = vmatpush2.msra.mxu0 0.0
    %555 = vmatprep.subr.mxu0 0.0
    %556 = vmatpush2.msra.mxu0 0.0
    %557 = vmatprep.subr.mxu0 0.0
    %558 = vmatpush2.msra.mxu0 0.0
    %559 = vmatprep.subr.mxu0 0.0
    %560 = vmatpush2.msra.mxu0 0.0
    %561 = vmatprep.subr.mxu0 0.0
    %562 = vmatpush2.msra.mxu0 0.0
    %563 = vmatprep.subr.mxu0 0.0
    %564 = vmatpush2.msra.mxu0 0.0
    %565 = vmatprep.subr.mxu0 0.0
    %566 = vmatpush2.msra.mxu0 0.0
    %567 = vmatprep.subr.mxu0 0.0
    %568 = vmatpush2.msra.mxu0 0.0
    %569 = vmatprep.subr.mxu0 0.0
    %570 = vmatpush2.msra.mxu0 0.0
    %571 = vmatprep.subr.mxu0 0.0
    %572 = vmatpush2.msra.mxu0 0.0
    %573 = vmatprep.mubr.f32.mxu0 0.0
    %574 = vmatmul.mubr.f32.gmra.mxu0 %v498
    %v575 = vpop.f32.mrf.mxu0
    %v576 = vadd.f32 %v479, %v575
    %v577 = vpop.f32.mrf.mxu0
    %578 = vmatprep.mubr.f32.mxu0 0.0
    %579 = vmatmul.mubr.f32.gmra.mxu0 %v501
    %v580 = vpop.f32.mrf.mxu0
    %v581 = vadd.f32 %v484, %v580
    %v582 = vpop.f32.mrf.mxu0
    %583 = vmatprep.mubr.f32.mxu0 0.0
    %584 = vmatmul.mubr.f32.gmra.mxu0 %v504
    %v585 = vpop.f32.mrf.mxu0
    %v586 = vadd.f32 %v489, %v585
    %v587 = vpop.f32.mrf.mxu0
    %588 = vmatprep.mubr.f32.mxu0 0.0
    %589 = vmatmul.mubr.f32.gmra.mxu0 %v507
    %v590 = vpop.f32.mrf.mxu0
    %v591 = vadd.f32 %v494, %v590
    %v592 = vpop.f32.mrf.mxu0
    %593 = vdwg.mxu0
    %v595 = vlaneseq
    %v596 = vshrl.u32 %v595, 7
    %v597 = vsub.s32 0, %v596
    %v598 = vrot.slane %v193, %v597
    %v600 = vadd.f32 %v576, %v598
    %v601 = vadd.f32 %v581, %v598
    %v602 = vadd.f32 %v586, %v598
    %v603 = vadd.f32 %v591, %v598
    %v604 = vsub.f32 0.0, %v600
    %v605 = vsub.f32 0.0, %v601
    %v606 = vsub.f32 0.0, %v602
    %v607 = vsub.f32 0.0, %v603
    %v608 = vmul.f32 %v604, 1.442695
    %v609 = vpow.pop %v608
    %v610 = vmul.f32 %v605, 1.442695
    %v611 = vpow.pop %v610
    %v612 = vmul.f32 %v606, 1.442695
    %v613 = vpow.pop %v612
    %v614 = vmul.f32 %v607, 1.442695
    %v615 = vpow.pop %v614
    %v616 = vadd.f32 %v609, 1.0
    %v617 = vadd.f32 %v611, 1.0
    %v618 = vadd.f32 %v613, 1.0
    %v619 = vadd.f32 %v615, 1.0
    %v620 = vrcp.pop %v616
    %v621 = vmul.f32 1.0, %v620
    %v622 = vrcp.pop %v617
    %v623 = vmul.f32 1.0, %v622
    %v624 = vrcp.pop %v618
    %v625 = vmul.f32 1.0, %v624
    %v626 = vrcp.pop %v619
    %v627 = vmul.f32 1.0, %v626
    %632 = vrot.lane.b32.xlu0 %v600, 32
    %v633 = vpop.permute.xlu0 %632
    %634 = vrot.lane.b32.xlu0 %v601, 32
    %v635 = vpop.permute.xlu0 %634
    %636 = vrot.lane.b32.xlu0 %v602, 32
    %v637 = vpop.permute.xlu0 %636
    %638 = vrot.lane.b32.xlu0 %v603, 32
    %v639 = vpop.permute.xlu0 %638
    %v644 = vmul.f32 %v621, %v633
    %v645 = vmul.f32 %v623, %v635
    %v646 = vmul.f32 %v625, %v637
    %v647 = vmul.f32 %v627, %v639
    %652 = vrot.lane.b32.xlu0 %v644, 64
    %v653 = vpop.permute.xlu0 %652
    %654 = vrot.lane.b32.xlu0 %v645, 64
    %v655 = vpop.permute.xlu0 %654
    %656 = vrot.lane.b32.xlu0 %v646, 64
    %v657 = vpop.permute.xlu0 %656
    %658 = vrot.lane.b32.xlu0 %v647, 64
    %v659 = vpop.permute.xlu0 %658
    %v664 = vadd.f32 %v600, %v653
    %v665 = vadd.f32 %v601, %v655
    %v666 = vadd.f32 %v602, %v657
    %v667 = vadd.f32 %v603, %v659
    %v668 = vtanh.pop %v664
    %v669 = vtanh.pop %v665
    %v670 = vtanh.pop %v666
    %v671 = vtanh.pop %v667
    %v672 = vsub.f32 1.0, %v621
    %v673 = vsub.f32 1.0, %v623
    %v674 = vsub.f32 1.0, %v625
    %v675 = vsub.f32 1.0, %v627
    %680 = vrot.lane.b32.xlu0 %v668, 96
    %v681 = vpop.permute.xlu0 %680
    %682 = vrot.lane.b32.xlu0 %v669, 96
    %v683 = vpop.permute.xlu0 %682
    %684 = vrot.lane.b32.xlu0 %v670, 96
    %v685 = vpop.permute.xlu0 %684
    %686 = vrot.lane.b32.xlu0 %v671, 96
    %v687 = vpop.permute.xlu0 %686
    %v692 = vmul.f32 %v672, %v681
    %v693 = vmul.f32 %v673, %v683
    %v694 = vmul.f32 %v674, %v685
    %v695 = vmul.f32 %v675, %v687
    %696 = vrot.lane.b32.xlu0 %v181, 32
    %v697 = vpop.permute.xlu0 %696
    %698 = vrot.lane.b32.xlu0 %v182, 32
    %v699 = vpop.permute.xlu0 %698
    %700 = vrot.lane.b32.xlu0 %v183, 32
    %v701 = vpop.permute.xlu0 %700
    %702 = vrot.lane.b32.xlu0 %v184, 32
    %v703 = vpop.permute.xlu0 %702
    %v708 = vmul.f32 %v621, %v697
    %v709 = vmul.f32 %v623, %v699
    %v710 = vmul.f32 %v625, %v701
    %v711 = vmul.f32 %v627, %v703
    %v712 = vadd.f32 %v692, %v708
    %v713 = vadd.f32 %v693, %v709
    %v714 = vadd.f32 %v694, %v710
    %v715 = vadd.f32 %v695, %v711
    %v716 = vstv %s199
    %v717 = vmul.f32 %v716, %v181
    %v718 = vmul.f32 %v716, %v182
    %v719 = vmul.f32 %v716, %v183
    %v720 = vmul.f32 %v716, %v184
    %725 = vrot.lane.b32.xlu0 %v717, 32
    %v726 = vpop.permute.xlu0 %725
    %727 = vrot.lane.b32.xlu0 %v718, 32
    %v728 = vpop.permute.xlu0 %727
    %729 = vrot.lane.b32.xlu0 %v719, 32
    %v730 = vpop.permute.xlu0 %729
    %731 = vrot.lane.b32.xlu0 %v720, 32
    %v732 = vpop.permute.xlu0 %731
    %v737 = vadd.f32 %v712, %v726
    %v738 = vadd.f32 %v713, %v728
    %v739 = vadd.f32 %v714, %v730
    %v740 = vadd.f32 %v715, %v732
    %v741 = vld [vmem:[%s6] sm:$0xff]
    %v742 = vld [vmem:[%s6 + $0x8] sm:$0xff]
    %v743 = vld [vmem:[%s6 + $0x10] sm:$0xff]
    %v744 = vld [vmem:[%s6 + $0x18] sm:$0xff]
    %v745 = vld [vmem:[%s7] sm:$0x1]
    %s746 = sld [smem:[#allocation2 + $0x1]]
    %751 = vrot.lane.b32.xlu0 %v737, 96
    %v752 = vpop.permute.xlu0 %751
    %753 = vrot.lane.b32.xlu0 %v738, 96
    %v754 = vpop.permute.xlu0 %753
    %755 = vrot.lane.b32.xlu0 %v739, 96
    %v756 = vpop.permute.xlu0 %755
    %757 = vrot.lane.b32.xlu0 %v740, 96
    %v758 = vpop.permute.xlu0 %757
    %763 = vmatprep.subr.mxu0 0.0
    %764 = vmatpush1.msra.mxu0 0.0
    %765 = vmatprep.subr.mxu0 0.0
    %766 = vmatpush1.msra.mxu0 0.0
    %767 = vmatprep.subr.mxu0 0.0
    %768 = vmatpush1.msra.mxu0 0.0
    %769 = vmatprep.subr.mxu0 0.0
    %770 = vmatpush1.msra.mxu0 0.0
    %771 = vmatprep.subr.mxu0 0.0
    %772 = vmatpush1.msra.mxu0 0.0
    %773 = vmatprep.subr.mxu0 0.0
    %774 = vmatpush1.msra.mxu0 0.0
    %775 = vmatprep.subr.mxu0 0.0
    %776 = vmatpush1.msra.mxu0 0.0
    %777 = vmatprep.subr.mxu0 0.0
    %778 = vmatpush1.msra.mxu0 0.0
    %779 = vmatprep.subr.mxu0 0.0
    %780 = vmatpush1.msra.mxu0 0.0
    %781 = vmatprep.subr.mxu0 0.0
    %782 = vmatpush1.msra.mxu0 0.0
    %783 = vmatprep.subr.mxu0 0.0
    %784 = vmatpush1.msra.mxu0 0.0
    %785 = vmatprep.subr.mxu0 0.0
    %786 = vmatpush1.msra.mxu0 0.0
    %787 = vmatprep.subr.mxu0 0.0
    %788 = vmatpush1.msra.mxu0 %v758
    %789 = vmatprep.subr.mxu0 0.0
    %790 = vmatpush1.msra.mxu0 %v756
    %791 = vmatprep.subr.mxu0 0.0
    %792 = vmatpush1.msra.mxu0 %v754
    %793 = vmatprep.subr.mxu0 0.0
    %794 = vmatpush1.msra.mxu0 %v752
    %795 = vmatprep.subr.mxu0 0.0
    %796 = vmatpush2.msra.mxu0 0.0
    %797 = vmatprep.subr.mxu0 0.0
    %798 = vmatpush2.msra.mxu0 0.0
    %799 = vmatprep.subr.mxu0 0.0
    %800 = vmatpush2.msra.mxu0 0.0
    %801 = vmatprep.subr.mxu0 0.0
    %802 = vmatpush2.msra.mxu0 0.0
    %803 = vmatprep.subr.mxu0 0.0
    %804 = vmatpush2.msra.mxu0 0.0
    %805 = vmatprep.subr.mxu0 0.0
    %806 = vmatpush2.msra.mxu0 0.0
    %807 = vmatprep.subr.mxu0 0.0
    %808 = vmatpush2.msra.mxu0 0.0
    %809 = vmatprep.subr.mxu0 0.0
    %810 = vmatpush2.msra.mxu0 0.0
    %811 = vmatprep.subr.mxu0 0.0
    %812 = vmatpush2.msra.mxu0 0.0
    %813 = vmatprep.subr.mxu0 0.0
    %814 = vmatpush2.msra.mxu0 0.0
    %815 = vmatprep.subr.mxu0 0.0
    %816 = vmatpush2.msra.mxu0 0.0
    %817 = vmatprep.subr.mxu0 0.0
    %818 = vmatpush2.msra.mxu0 0.0
    %819 = vmatprep.subr.mxu0 0.0
    %820 = vmatpush2.msra.mxu0 0.0
    %821 = vmatprep.subr.mxu0 0.0
    %822 = vmatpush2.msra.mxu0 0.0
    %823 = vmatprep.subr.mxu0 0.0
    %824 = vmatpush2.msra.mxu0 0.0
    %825 = vmatprep.subr.mxu0 0.0
    %826 = vmatpush2.msra.mxu0 0.0
    %827 = vmatprep.mubr.f32.mxu0 0.0
    %828 = vmatmul.mubr.f32.gmra.mxu0 %v201
    %v829 = vpop.f32.mrf.mxu0
    %v830 = vadd.f32 0.0, %v829
    %v831 = vpop.f32.mrf.mxu0
    %832 = vmatprep.mubr.f32.mxu0 0.0
    %833 = vmatmul.mubr.f32.gmra.mxu0 %v204
    %v834 = vpop.f32.mrf.mxu0
    %v835 = vadd.f32 0.0, %v834
    %v836 = vpop.f32.mrf.mxu0
    %837 = vmatprep.mubr.f32.mxu0 0.0
    %838 = vmatmul.mubr.f32.gmra.mxu0 %v207
    %v839 = vpop.f32.mrf.mxu0
    %v840 = vadd.f32 0.0, %v839
    %v841 = vpop.f32.mrf.mxu0
    %842 = vmatprep.mubr.f32.mxu0 0.0
    %843 = vmatmul.mubr.f32.gmra.mxu0 %v210
    %v844 = vpop.f32.mrf.mxu0
    %v845 = vadd.f32 0.0, %v844
    %v846 = vpop.f32.mrf.mxu0
    %847 = vdwg.mxu0
    %v849 = vlaneseq
    %v850 = vshrl.u32 %v849, 7
    %v851 = vsub.s32 0, %v850
    %v852 = vrot.slane %v745, %v851
    %v855 = vsel %vm83, %v830, 0
    %v858 = vsel %vm83, %v835, 0
    %v861 = vsel %vm83, %v840, 0
    %v864 = vsel %vm83, %v845, 0
    %866 = vmatprep.subr.mxu0 0.0
    %867 = vmatpush1.msra.mxu0 0.0
    %868 = vmatprep.subr.mxu0 0.0
    %869 = vmatpush1.msra.mxu0 0.0
    %870 = vmatprep.subr.mxu0 0.0
    %871 = vmatpush1.msra.mxu0 0.0
    %872 = vmatprep.subr.mxu0 0.0
    %873 = vmatpush1.msra.mxu0 0.0
    %874 = vmatprep.subr.mxu0 0.0
    %875 = vmatpush1.msra.mxu0 0.0
    %876 = vmatprep.subr.mxu0 0.0
    %877 = vmatpush1.msra.mxu0 0.0
    %878 = vmatprep.subr.mxu0 0.0
    %879 = vmatpush1.msra.mxu0 0.0
    %880 = vmatprep.subr.mxu0 0.0
    %881 = vmatpush1.msra.mxu0 0.0
    %882 = vmatprep.subr.mxu0 0.0
    %883 = vmatpush1.msra.mxu0 0.0
    %884 = vmatprep.subr.mxu0 0.0
    %885 = vmatpush1.msra.mxu0 0.0
    %886 = vmatprep.subr.mxu0 0.0
    %887 = vmatpush1.msra.mxu0 0.0
    %888 = vmatprep.subr.mxu0 0.0
    %889 = vmatpush1.msra.mxu0 0.0
    %890 = vmatprep.subr.mxu0 0.0
    %891 = vmatpush1.msra.mxu0 %v744
    %892 = vmatprep.subr.mxu0 0.0
    %893 = vmatpush1.msra.mxu0 %v743
    %894 = vmatprep.subr.mxu0 0.0
    %895 = vmatpush1.msra.mxu0 %v742
    %896 = vmatprep.subr.mxu0 0.0
    %897 = vmatpush1.msra.mxu0 %v741
    %898 = vmatprep.subr.mxu0 0.0
    %899 = vmatpush2.msra.mxu0 0.0
    %900 = vmatprep.subr.mxu0 0.0
    %901 = vmatpush2.msra.mxu0 0.0
    %902 = vmatprep.subr.mxu0 0.0
    %903 = vmatpush2.msra.mxu0 0.0
    %904 = vmatprep.subr.mxu0 0.0
    %905 = vmatpush2.msra.mxu0 0.0
    %906 = vmatprep.subr.mxu0 0.0
    %907 = vmatpush2.msra.mxu0 0.0
    %908 = vmatprep.subr.mxu0 0.0
    %909 = vmatpush2.msra.mxu0 0.0
    %910 = vmatprep.subr.mxu0 0.0
    %911 = vmatpush2.msra.mxu0 0.0
    %912 = vmatprep.subr.mxu0 0.0
    %913 = vmatpush2.msra.mxu0 0.0
    %914 = vmatprep.subr.mxu0 0.0
    %915 = vmatpush2.msra.mxu0 0.0
    %916 = vmatprep.subr.mxu0 0.0
    %917 = vmatpush2.msra.mxu0 0.0
    %918 = vmatprep.subr.mxu0 0.0
    %919 = vmatpush2.msra.mxu0 0.0
    %920 = vmatprep.subr.mxu0 0.0
    %921 = vmatpush2.msra.mxu0 0.0
    %922 = vmatprep.subr.mxu0 0.0
    %923 = vmatpush2.msra.mxu0 0.0
    %924 = vmatprep.subr.mxu0 0.0
    %925 = vmatpush2.msra.mxu0 0.0
    %926 = vmatprep.subr.mxu0 0.0
    %927 = vmatpush2.msra.mxu0 0.0
    %928 = vmatprep.subr.mxu0 0.0
    %929 = vmatpush2.msra.mxu0 0.0
    %930 = vmatprep.mubr.f32.mxu0 0.0
    %931 = vmatmul.mubr.f32.gmra.mxu0 %v855
    %v932 = vpop.f32.mrf.mxu0
    %v933 = vadd.f32 %v852, %v932
    %v934 = vpop.f32.mrf.mxu0
    %935 = vmatprep.mubr.f32.mxu0 0.0
    %936 = vmatmul.mubr.f32.gmra.mxu0 %v858
    %v937 = vpop.f32.mrf.mxu0
    %v938 = vadd.f32 %v852, %v937
    %v939 = vpop.f32.mrf.mxu0
    %940 = vmatprep.mubr.f32.mxu0 0.0
    %941 = vmatmul.mubr.f32.gmra.mxu0 %v861
    %v942 = vpop.f32.mrf.mxu0
    %v943 = vadd.f32 %v852, %v942
    %v944 = vpop.f32.mrf.mxu0
    %945 = vmatprep.mubr.f32.mxu0 0.0
    %946 = vmatmul.mubr.f32.gmra.mxu0 %v864
    %v947 = vpop.f32.mrf.mxu0
    %v948 = vadd.f32 %v852, %v947
    %v949 = vpop.f32.mrf.mxu0
    %950 = vdwg.mxu0
    %v951 = vsel %vm83, %v752, 0
    %v953 = vsel %vm83, %v754, 0
    %v955 = vsel %vm83, %v756, 0
    %v957 = vsel %vm83, %v758, 0
    %959 = vmatprep.subr.mxu0 0.0
    %960 = vmatpush1.msra.mxu0 0.0
    %961 = vmatprep.subr.mxu0 0.0
    %962 = vmatpush1.msra.mxu0 0.0
    %963 = vmatprep.subr.mxu0 0.0
    %964 = vmatpush1.msra.mxu0 0.0
    %965 = vmatprep.subr.mxu0 0.0
    %966 = vmatpush1.msra.mxu0 0.0
    %967 = vmatprep.subr.mxu0 0.0
    %968 = vmatpush1.msra.mxu0 0.0
    %969 = vmatprep.subr.mxu0 0.0
    %970 = vmatpush1.msra.mxu0 0.0
    %971 = vmatprep.subr.mxu0 0.0
    %972 = vmatpush1.msra.mxu0 0.0
    %973 = vmatprep.subr.mxu0 0.0
    %974 = vmatpush1.msra.mxu0 0.0
    %975 = vmatprep.subr.mxu0 0.0
    %976 = vmatpush1.msra.mxu0 0.0
    %977 = vmatprep.subr.mxu0 0.0
    %978 = vmatpush1.msra.mxu0 0.0
    %979 = vmatprep.subr.mxu0 0.0
    %980 = vmatpush1.msra.mxu0 0.0
    %981 = vmatprep.subr.mxu0 0.0
    %982 = vmatpush1.msra.mxu0 0.0
    %983 = vmatprep.subr.mxu0 0.0
    %984 = vmatpush1.msra.mxu0 %v192
    %985 = vmatprep.subr.mxu0 0.0
    %986 = vmatpush1.msra.mxu0 %v191
    %987 = vmatprep.subr.mxu0 0.0
    %988 = vmatpush1.msra.mxu0 %v190
    %989 = vmatprep.subr.mxu0 0.0
    %990 = vmatpush1.msra.mxu0 %v189
    %991 = vmatprep.subr.mxu0 0.0
    %992 = vmatpush2.msra.mxu0 0.0
    %993 = vmatprep.subr.mxu0 0.0
    %994 = vmatpush2.msra.mxu0 0.0
    %995 = vmatprep.subr.mxu0 0.0
    %996 = vmatpush2.msra.mxu0 0.0
    %997 = vmatprep.subr.mxu0 0.0
    %998 = vmatpush2.msra.mxu0 0.0
    %999 = vmatprep.subr.mxu0 0.0
    %1000 = vmatpush2.msra.mxu0 0.0
    %1001 = vmatprep.subr.mxu0 0.0
    %1002 = vmatpush2.msra.mxu0 0.0
    %1003 = vmatprep.subr.mxu0 0.0
    %1004 = vmatpush2.msra.mxu0 0.0
    %1005 = vmatprep.subr.mxu0 0.0
    %1006 = vmatpush2.msra.mxu0 0.0
    %1007 = vmatprep.subr.mxu0 0.0
    %1008 = vmatpush2.msra.mxu0 0.0
    %1009 = vmatprep.subr.mxu0 0.0
    %1010 = vmatpush2.msra.mxu0 0.0
    %1011 = vmatprep.subr.mxu0 0.0
    %1012 = vmatpush2.msra.mxu0 0.0
    %1013 = vmatprep.subr.mxu0 0.0
    %1014 = vmatpush2.msra.mxu0 0.0
    %1015 = vmatprep.subr.mxu0 0.0
    %1016 = vmatpush2.msra.mxu0 0.0
    %1017 = vmatprep.subr.mxu0 0.0
    %1018 = vmatpush2.msra.mxu0 0.0
    %1019 = vmatprep.subr.mxu0 0.0
    %1020 = vmatpush2.msra.mxu0 0.0
    %1021 = vmatprep.subr.mxu0 0.0
    %1022 = vmatpush2.msra.mxu0 0.0
    %1023 = vmatprep.mubr.f32.mxu0 0.0
    %1024 = vmatmul.mubr.f32.gmra.mxu0 %v951
    %v1025 = vpop.f32.mrf.mxu0
    %v1026 = vadd.f32 0.0, %v1025
    %v1027 = vpop.f32.mrf.mxu0
    %1028 = vmatprep.mubr.f32.mxu0 0.0
    %1029 = vmatmul.mubr.f32.gmra.mxu0 %v953
    %v1030 = vpop.f32.mrf.mxu0
    %v1031 = vadd.f32 0.0, %v1030
    %v1032 = vpop.f32.mrf.mxu0
    %1033 = vmatprep.mubr.f32.mxu0 0.0
    %1034 = vmatmul.mubr.f32.gmra.mxu0 %v955
    %v1035 = vpop.f32.mrf.mxu0
    %v1036 = vadd.f32 0.0, %v1035
    %v1037 = vpop.f32.mrf.mxu0
    %1038 = vmatprep.mubr.f32.mxu0 0.0
    %1039 = vmatmul.mubr.f32.gmra.mxu0 %v957
    %v1040 = vpop.f32.mrf.mxu0
    %v1041 = vadd.f32 0.0, %v1040
    %v1042 = vpop.f32.mrf.mxu0
    %1043 = vdwg.mxu0
    %v1045 = vsel %vm83, %v933, 0
    %v1048 = vsel %vm83, %v938, 0
    %v1051 = vsel %vm83, %v943, 0
    %v1054 = vsel %vm83, %v948, 0
    %1056 = vmatprep.subr.mxu0 0.0
    %1057 = vmatpush1.msra.mxu0 0.0
    %1058 = vmatprep.subr.mxu0 0.0
    %1059 = vmatpush1.msra.mxu0 0.0
    %1060 = vmatprep.subr.mxu0 0.0
    %1061 = vmatpush1.msra.mxu0 0.0
    %1062 = vmatprep.subr.mxu0 0.0
    %1063 = vmatpush1.msra.mxu0 0.0
    %1064 = vmatprep.subr.mxu0 0.0
    %1065 = vmatpush1.msra.mxu0 0.0
    %1066 = vmatprep.subr.mxu0 0.0
    %1067 = vmatpush1.msra.mxu0 0.0
    %1068 = vmatprep.subr.mxu0 0.0
    %1069 = vmatpush1.msra.mxu0 0.0
    %1070 = vmatprep.subr.mxu0 0.0
    %1071 = vmatpush1.msra.mxu0 0.0
    %1072 = vmatprep.subr.mxu0 0.0
    %1073 = vmatpush1.msra.mxu0 0.0
    %1074 = vmatprep.subr.mxu0 0.0
    %1075 = vmatpush1.msra.mxu0 0.0
    %1076 = vmatprep.subr.mxu0 0.0
    %1077 = vmatpush1.msra.mxu0 0.0
    %1078 = vmatprep.subr.mxu0 0.0
    %1079 = vmatpush1.msra.mxu0 0.0
    %1080 = vmatprep.subr.mxu0 0.0
    %1081 = vmatpush1.msra.mxu0 %v188
    %1082 = vmatprep.subr.mxu0 0.0
    %1083 = vmatpush1.msra.mxu0 %v187
    %1084 = vmatprep.subr.mxu0 0.0
    %1085 = vmatpush1.msra.mxu0 %v186
    %1086 = vmatprep.subr.mxu0 0.0
    %1087 = vmatpush1.msra.mxu0 %v185
    %1088 = vmatprep.subr.mxu0 0.0
    %1089 = vmatpush2.msra.mxu0 0.0
    %1090 = vmatprep.subr.mxu0 0.0
    %1091 = vmatpush2.msra.mxu0 0.0
    %1092 = vmatprep.subr.mxu0 0.0
    %1093 = vmatpush2.msra.mxu0 0.0
    %1094 = vmatprep.subr.mxu0 0.0
    %1095 = vmatpush2.msra.mxu0 0.0
    %1096 = vmatprep.subr.mxu0 0.0
    %1097 = vmatpush2.msra.mxu0 0.0
    %1098 = vmatprep.subr.mxu0 0.0
    %1099 = vmatpush2.msra.mxu0 0.0
    %1100 = vmatprep.subr.mxu0 0.0
    %1101 = vmatpush2.msra.mxu0 0.0
    %1102 = vmatprep.subr.mxu0 0.0
    %1103 = vmatpush2.msra.mxu0 0.0
    %1104 = vmatprep.subr.mxu0 0.0
    %1105 = vmatpush2.msra.mxu0 0.0
    %1106 = vmatprep.subr.mxu0 0.0
    %1107 = vmatpush2.msra.mxu0 0.0
    %1108 = vmatprep.subr.mxu0 0.0
    %1109 = vmatpush2.msra.mxu0 0.0
    %1110 = vmatprep.subr.mxu0 0.0
    %1111 = vmatpush2.msra.mxu0 0.0
    %1112 = vmatprep.subr.mxu0 0.0
    %1113 = vmatpush2.msra.mxu0 0.0
    %1114 = vmatprep.subr.mxu0 0.0
    %1115 = vmatpush2.msra.mxu0 0.0
    %1116 = vmatprep.subr.mxu0 0.0
    %1117 = vmatpush2.msra.mxu0 0.0
    %1118 = vmatprep.subr.mxu0 0.0
    %1119 = vmatpush2.msra.mxu0 0.0
    %1120 = vmatprep.mubr.f32.mxu0 0.0
    %1121 = vmatmul.mubr.f32.gmra.mxu0 %v1045
    %v1122 = vpop.f32.mrf.mxu0
    %v1123 = vadd.f32 %v1026, %v1122
    %v1124 = vpop.f32.mrf.mxu0
    %1125 = vmatprep.mubr.f32.mxu0 0.0
    %1126 = vmatmul.mubr.f32.gmra.mxu0 %v1048
    %v1127 = vpop.f32.mrf.mxu0
    %v1128 = vadd.f32 %v1031, %v1127
    %v1129 = vpop.f32.mrf.mxu0
    %1130 = vmatprep.mubr.f32.mxu0 0.0
    %1131 = vmatmul.mubr.f32.gmra.mxu0 %v1051
    %v1132 = vpop.f32.mrf.mxu0
    %v1133 = vadd.f32 %v1036, %v1132
    %v1134 = vpop.f32.mrf.mxu0
    %1135 = vmatprep.mubr.f32.mxu0 0.0
    %1136 = vmatmul.mubr.f32.gmra.mxu0 %v1054
    %v1137 = vpop.f32.mrf.mxu0
    %v1138 = vadd.f32 %v1041, %v1137
    %v1139 = vpop.f32.mrf.mxu0
    %1140 = vdwg.mxu0
    %v1141 = vadd.f32 %v1123, %v598
    %v1142 = vadd.f32 %v1128, %v598
    %v1143 = vadd.f32 %v1133, %v598
    %v1144 = vadd.f32 %v1138, %v598
    %v1145 = vsub.f32 0.0, %v1141
    %v1146 = vsub.f32 0.0, %v1142
    %v1147 = vsub.f32 0.0, %v1143
    %v1148 = vsub.f32 0.0, %v1144
    %v1149 = vmul.f32 %v1145, 1.442695
    %v1150 = vpow.pop %v1149
    %v1151 = vmul.f32 %v1146, 1.442695
    %v1152 = vpow.pop %v1151
    %v1153 = vmul.f32 %v1147, 1.442695
    %v1154 = vpow.pop %v1153
    %v1155 = vmul.f32 %v1148, 1.442695
    %v1156 = vpow.pop %v1155
    %v1157 = vadd.f32 %v1150, 1.0
    %v1158 = vadd.f32 %v1152, 1.0
    %v1159 = vadd.f32 %v1154, 1.0
    %v1160 = vadd.f32 %v1156, 1.0
    %v1161 = vrcp.pop %v1157
    %v1162 = vmul.f32 1.0, %v1161
    %v1163 = vrcp.pop %v1158
    %v1164 = vmul.f32 1.0, %v1163
    %v1165 = vrcp.pop %v1159
    %v1166 = vmul.f32 1.0, %v1165
    %v1167 = vrcp.pop %v1160
    %v1168 = vmul.f32 1.0, %v1167
    %1173 = vrot.lane.b32.xlu0 %v1141, 32
    %v1174 = vpop.permute.xlu0 %1173
    %1175 = vrot.lane.b32.xlu0 %v1142, 32
    %v1176 = vpop.permute.xlu0 %1175
    %1177 = vrot.lane.b32.xlu0 %v1143, 32
    %v1178 = vpop.permute.xlu0 %1177
    %1179 = vrot.lane.b32.xlu0 %v1144, 32
    %v1180 = vpop.permute.xlu0 %1179
    %v1185 = vmul.f32 %v1162, %v1174
    %v1186 = vmul.f32 %v1164, %v1176
    %v1187 = vmul.f32 %v1166, %v1178
    %v1188 = vmul.f32 %v1168, %v1180
    %1193 = vrot.lane.b32.xlu0 %v1185, 64
    %v1194 = vpop.permute.xlu0 %1193
    %1195 = vrot.lane.b32.xlu0 %v1186, 64
    %v1196 = vpop.permute.xlu0 %1195
    %1197 = vrot.lane.b32.xlu0 %v1187, 64
    %v1198 = vpop.permute.xlu0 %1197
    %1199 = vrot.lane.b32.xlu0 %v1188, 64
    %v1200 = vpop.permute.xlu0 %1199
    %v1205 = vadd.f32 %v1141, %v1194
    %v1206 = vadd.f32 %v1142, %v1196
    %v1207 = vadd.f32 %v1143, %v1198
    %v1208 = vadd.f32 %v1144, %v1200
    %v1209 = vtanh.pop %v1205
    %v1210 = vtanh.pop %v1206
    %v1211 = vtanh.pop %v1207
    %v1212 = vtanh.pop %v1208
    %v1213 = vsub.f32 1.0, %v1162
    %v1214 = vsub.f32 1.0, %v1164
    %v1215 = vsub.f32 1.0, %v1166
    %v1216 = vsub.f32 1.0, %v1168
    %1221 = vrot.lane.b32.xlu0 %v1209, 96
    %v1222 = vpop.permute.xlu0 %1221
    %1223 = vrot.lane.b32.xlu0 %v1210, 96
    %v1224 = vpop.permute.xlu0 %1223
    %1225 = vrot.lane.b32.xlu0 %v1211, 96
    %v1226 = vpop.permute.xlu0 %1225
    %1227 = vrot.lane.b32.xlu0 %v1212, 96
    %v1228 = vpop.permute.xlu0 %1227
    %v1233 = vmul.f32 %v1213, %v1222
    %v1234 = vmul.f32 %v1214, %v1224
    %v1235 = vmul.f32 %v1215, %v1226
    %v1236 = vmul.f32 %v1216, %v1228
    %v1237 = vmul.f32 %v1162, %v737
    %v1238 = vmul.f32 %v1164, %v738
    %v1239 = vmul.f32 %v1166, %v739
    %v1240 = vmul.f32 %v1168, %v740
    %v1241 = vadd.f32 %v1233, %v1237
    %v1242 = vadd.f32 %v1234, %v1238
    %v1243 = vadd.f32 %v1235, %v1239
    %v1244 = vadd.f32 %v1236, %v1240
    %v1245 = vstv %s746
    %v1246 = vmul.f32 %v1245, %v737
    %v1247 = vmul.f32 %v1245, %v738
    %v1248 = vmul.f32 %v1245, %v739
    %v1249 = vmul.f32 %v1245, %v740
    %v1250 = vadd.f32 %v1241, %v1246
    %v1251 = vadd.f32 %v1242, %v1247
    %v1252 = vadd.f32 %v1243, %v1248
    %v1253 = vadd.f32 %v1244, %v1249
    %v1254 = vld [vmem:[%s12] sm:$0xff]
    %v1255 = vld [vmem:[%s12 + $0x8] sm:$0xff]
    %v1256 = vld [vmem:[%s12 + $0x10] sm:$0xff]
    %v1257 = vld [vmem:[%s12 + $0x18] sm:$0xff]
    %v1258 = vld [vmem:[%s13] sm:$0x1]
    %v1260 = vlaneseq
    %v1261 = vshrl.u32 %v1260, 7
    %v1262 = vsub.s32 0, %v1261
    %v1263 = vrot.slane %v1258, %v1262
    %1269 = vrot.lane.b32.xlu0 %v1250, 96
    %v1270 = vpop.permute.xlu0 %1269
    %1271 = vrot.lane.b32.xlu0 %v1251, 96
    %v1272 = vpop.permute.xlu0 %1271
    %1273 = vrot.lane.b32.xlu0 %v1252, 96
    %v1274 = vpop.permute.xlu0 %1273
    %1275 = vrot.lane.b32.xlu0 %v1253, 96
    %v1276 = vpop.permute.xlu0 %1275
    %v1277 = vsel %vm83, %v1270, 0
    %v1279 = vsel %vm83, %v1272, 0
    %v1281 = vsel %vm83, %v1274, 0
    %v1283 = vsel %vm83, %v1276, 0
    %1285 = vmatprep.subr.mxu0 0.0
    %1286 = vmatpush1.msra.mxu0 0.0
    %1287 = vmatprep.subr.mxu0 0.0
    %1288 = vmatpush1.msra.mxu0 0.0
    %1289 = vmatprep.subr.mxu0 0.0
    %1290 = vmatpush1.msra.mxu0 0.0
    %1291 = vmatprep.subr.mxu0 0.0
    %1292 = vmatpush1.msra.mxu0 0.0
    %1293 = vmatprep.subr.mxu0 0.0
    %1294 = vmatpush1.msra.mxu0 0.0
    %1295 = vmatprep.subr.mxu0 0.0
    %1296 = vmatpush1.msra.mxu0 0.0
    %1297 = vmatprep.subr.mxu0 0.0
    %1298 = vmatpush1.msra.mxu0 0.0
    %1299 = vmatprep.subr.mxu0 0.0
    %1300 = vmatpush1.msra.mxu0 0.0
    %1301 = vmatprep.subr.mxu0 0.0
    %1302 = vmatpush1.msra.mxu0 0.0
    %1303 = vmatprep.subr.mxu0 0.0
    %1304 = vmatpush1.msra.mxu0 0.0
    %1305 = vmatprep.subr.mxu0 0.0
    %1306 = vmatpush1.msra.mxu0 0.0
    %1307 = vmatprep.subr.mxu0 0.0
    %1308 = vmatpush1.msra.mxu0 0.0
    %1309 = vmatprep.subr.mxu0 0.0
    %1310 = vmatpush1.msra.mxu0 %v1257
    %1311 = vmatprep.subr.mxu0 0.0
    %1312 = vmatpush1.msra.mxu0 %v1256
    %1313 = vmatprep.subr.mxu0 0.0
    %1314 = vmatpush1.msra.mxu0 %v1255
    %1315 = vmatprep.subr.mxu0 0.0
    %1316 = vmatpush1.msra.mxu0 %v1254
    %1317 = vmatprep.subr.mxu0 0.0
    %1318 = vmatpush2.msra.mxu0 0.0
    %1319 = vmatprep.subr.mxu0 0.0
    %1320 = vmatpush2.msra.mxu0 0.0
    %1321 = vmatprep.subr.mxu0 0.0
    %1322 = vmatpush2.msra.mxu0 0.0
    %1323 = vmatprep.subr.mxu0 0.0
    %1324 = vmatpush2.msra.mxu0 0.0
    %1325 = vmatprep.subr.mxu0 0.0
    %1326 = vmatpush2.msra.mxu0 0.0
    %1327 = vmatprep.subr.mxu0 0.0
    %1328 = vmatpush2.msra.mxu0 0.0
    %1329 = vmatprep.subr.mxu0 0.0
    %1330 = vmatpush2.msra.mxu0 0.0
    %1331 = vmatprep.subr.mxu0 0.0
    %1332 = vmatpush2.msra.mxu0 0.0
    %1333 = vmatprep.subr.mxu0 0.0
    %1334 = vmatpush2.msra.mxu0 0.0
    %1335 = vmatprep.subr.mxu0 0.0
    %1336 = vmatpush2.msra.mxu0 0.0
    %1337 = vmatprep.subr.mxu0 0.0
    %1338 = vmatpush2.msra.mxu0 0.0
    %1339 = vmatprep.subr.mxu0 0.0
    %1340 = vmatpush2.msra.mxu0 0.0
    %1341 = vmatprep.subr.mxu0 0.0
    %1342 = vmatpush2.msra.mxu0 0.0
    %1343 = vmatprep.subr.mxu0 0.0
    %1344 = vmatpush2.msra.mxu0 0.0
    %1345 = vmatprep.subr.mxu0 0.0
    %1346 = vmatpush2.msra.mxu0 0.0
    %1347 = vmatprep.subr.mxu0 0.0
    %1348 = vmatpush2.msra.mxu0 0.0
    %1349 = vmatprep.mubr.f32.mxu0 0.0
    %1350 = vmatmul.mubr.f32.gmra.mxu0 %v1277
    %v1351 = vpop.f32.mrf.mxu0
    %v1352 = vadd.f32 %v1263, %v1351
    %v1353 = vpop.f32.mrf.mxu0
    %1354 = vmatprep.mubr.f32.mxu0 0.0
    %1355 = vmatmul.mubr.f32.gmra.mxu0 %v1279
    %v1356 = vpop.f32.mrf.mxu0
    %v1357 = vadd.f32 %v1263, %v1356
    %v1358 = vpop.f32.mrf.mxu0
    %1359 = vmatprep.mubr.f32.mxu0 0.0
    %1360 = vmatmul.mubr.f32.gmra.mxu0 %v1281
    %v1361 = vpop.f32.mrf.mxu0
    %v1362 = vadd.f32 %v1263, %v1361
    %v1363 = vpop.f32.mrf.mxu0
    %1364 = vmatprep.mubr.f32.mxu0 0.0
    %1365 = vmatmul.mubr.f32.gmra.mxu0 %v1283
    %v1366 = vpop.f32.mrf.mxu0
    %v1367 = vadd.f32 %v1263, %v1366
    %v1368 = vpop.f32.mrf.mxu0
    %1369 = vdwg.mxu0
    %1370 = vmax.xlane.f32.xlu0 %v1352
    %v1371 = vpop.xlane.xlu0 %1370
    %1372 = vmax.xlane.f32.xlu0 %v1357
    %v1373 = vpop.xlane.xlu0 %1372
    %1374 = vmax.xlane.f32.xlu0 %v1362
    %v1375 = vpop.xlane.xlu0 %1374
    %1376 = vmax.xlane.f32.xlu0 %v1367
    %v1377 = vpop.xlane.xlu0 %1376
    %v1378 = vsub.f32 %v1352, %v1371
    %v1379 = vsub.f32 %v1357, %v1373
    %v1380 = vsub.f32 %v1362, %v1375
    %v1381 = vsub.f32 %v1367, %v1377
    %v1382 = vmul.f32 %v1378, 1.442695
    %v1383 = vpow.pop %v1382
    %v1384 = vmul.f32 %v1379, 1.442695
    %v1385 = vpow.pop %v1384
    %v1386 = vmul.f32 %v1380, 1.442695
    %v1387 = vpow.pop %v1386
    %v1388 = vmul.f32 %v1381, 1.442695
    %v1389 = vpow.pop %v1388
    %1390 = vadd.xlane.f32.xlu0 %v1383
    %v1391 = vpop.xlane.xlu0 %1390
    %1392 = vadd.xlane.f32.xlu0 %v1385
    %v1393 = vpop.xlane.xlu0 %1392
    %1394 = vadd.xlane.f32.xlu0 %v1387
    %v1395 = vpop.xlane.xlu0 %1394
    %1396 = vadd.xlane.f32.xlu0 %v1389
    %v1397 = vpop.xlane.xlu0 %1396
    %v1398 = vlog2.pop %v1391
    %v1399 = vmul.f32 %v1398, 0.6931472
    %v1400 = vlog2.pop %v1393
    %v1401 = vmul.f32 %v1400, 0.6931472
    %v1402 = vlog2.pop %v1395
    %v1403 = vmul.f32 %v1402, 0.6931472
    %v1404 = vlog2.pop %v1397
    %v1405 = vmul.f32 %v1404, 0.6931472
    %v1406 = vsub.f32 %v1378, %v1399
    %v1407 = vsub.f32 %v1379, %v1401
    %v1408 = vsub.f32 %v1380, %v1403
    %v1409 = vsub.f32 %v1381, %v1405
    %1410 = vst [vmem:[%s14] sm:$0xff] %v1406
    %1411 = vst [vmem:[%s14 + $0x8] sm:$0xff] %v1407
    %1412 = vst [vmem:[%s14 + $0x10] sm:$0xff] %v1408
    %1413 = vst [vmem:[%s14 + $0x18] sm:$0xff] %v1409
    // Predicated region
    $region62: #{gated_gcn_forward.1} parent=1 // pred_check
      _
    $region63: #{gated_gcn_forward.1} parent=1 // pred_check_branch
      %1415 = sbr.rel (0) target = $region65
    $region64: #{gated_gcn_forward.1} parent=1 // pred_region
      _
    $region65: #{gated_gcn_forward.1} parent=1 // pred_fallthru
      _
    // Predicated region
    $region66: #{gated_gcn_forward.1} parent=1 // pred_check
      _
    $region67: #{gated_gcn_forward.1} parent=1 // pred_check_branch
      %1417 = sbr.rel (0) target = $region69
    $region68: #{gated_gcn_forward.1} parent=1 // pred_region
      _
    $region69: #{gated_gcn_forward.1} parent=1 // pred_fallthru
      _
    %1418 = vsyncpa [#allocation3], 1

</llo_original>
